<compile_context>
chip_gen: v6e
topology: v6e:2x2x1
jax: 0.10.0
libtpu: 0.0.40
codegen_flags: <defaults>
</compile_context>

<pallas_src>
import functools

import jax
import jax.numpy as jnp
from jax.experimental import pallas as pl
from jax.experimental.pallas import tpu as pltpu

PAD_token = 0
_NEG_BIG = -1e30  # mask value for padded vocab columns (exp() underflows to 0)


def _round_up(x, m):
    return (x + m - 1) // m * m


def _choose_tiles(hidden_size, vocab_size):
    """Padded hidden width, vocab tile width, padded vocab width."""
    hp = _round_up(hidden_size, 128)                      # lane-aligned hidden
    tile_v = min(512, _round_up(vocab_size, 128))         # lane-dense out tiles
    vp = _round_up(vocab_size, tile_v)
    return hp, tile_v, vp


# ---------------------------------------------------------------------------
# Kernel: GRU step (grid step 0) + vocab-tiled output projection with online
# log-sum-exp accumulated in VMEM scratch across the vocab grid axis.
# ---------------------------------------------------------------------------
def _decoder_step_kernel(emb_ref, h_ref, wi_ref, wh_ref, brzn_ref, bhn_ref,
                         wout_ref, bout_ref,
                         logits_ref, lse_ref, hnew_ref,
                         h_scr, m_scr, l_scr):
    j = pl.program_id(0)
    hp = h_ref.shape[1]

    @pl.when(j == 0)
    def _():
        # Embedding output -> ReLU -> fused GRU gates (2 matmuls instead of 6).
        x = jnp.maximum(emb_ref[...], 0.0).astype(jnp.bfloat16)
        h = h_ref[...]
        gi = jnp.dot(x, wi_ref[...],
                     preferred_element_type=jnp.float32) + brzn_ref[...]
        gh = jnp.dot(h.astype(jnp.bfloat16), wh_ref[...],
                     preferred_element_type=jnp.float32)
        # gate order: r | z | n   (PyTorch nn.GRU)
        r = jax.nn.sigmoid(gi[:, 0:hp] + gh[:, 0:hp])
        z = jax.nn.sigmoid(gi[:, hp:2 * hp] + gh[:, hp:2 * hp])
        n = jnp.tanh(gi[:, 2 * hp:3 * hp]
                     + r * (gh[:, 2 * hp:3 * hp] + bhn_ref[...]))
        h_new = (1.0 - z) * n + z * h
        h_scr[...] = h_new
        hnew_ref[...] = h_new
        # init online-softmax state
        m_scr[...] = jnp.full(m_scr.shape, _NEG_BIG, dtype=jnp.float32)
        l_scr[...] = jnp.zeros(l_scr.shape, dtype=jnp.float32)

    # Output projection for this vocab tile (bf16 weights, f32 accumulate).
    logits = jnp.dot(h_scr[...].astype(jnp.bfloat16), wout_ref[...],
                     preferred_element_type=jnp.float32) + bout_ref[...]
    logits_ref[...] = logits

    # Online log-sum-exp over the vocab grid axis.
    m_prev = m_scr[...]
    m_new = jnp.maximum(m_prev, jnp.max(logits, axis=1, keepdims=True))
    l_scr[...] = (l_scr[...] * jnp.exp(m_prev - m_new)
                  + jnp.sum(jnp.exp(logits - m_new), axis=1, keepdims=True))
    m_scr[...] = m_new

    @pl.when(j == pl.num_programs(0) - 1)
    def _():
        lse_ref[...] = m_scr[...] + jnp.log(l_scr[...])


# ---------------------------------------------------------------------------
# Parameter init (matches the PyTorch module) + TPU-friendly packing.
# ---------------------------------------------------------------------------
def init_params(key, hidden_size, vocab_size):
    kE, kih, khh, kbih, kbhh, kWo, kbo = jax.random.split(key, 7)
    H, V = hidden_size, vocab_size
    Hp, _, Vp = _choose_tiles(H, V)

    # nn.Embedding(vocab, hidden, padding_idx=PAD_token)
    embedding = jax.random.normal(kE, (V, H), dtype=jnp.float32)
    embedding = embedding.at[PAD_token].set(0.0)

    # nn.GRU(H, H): U(-1/sqrt(H), 1/sqrt(H)), weights (3H, H), gate order r,z,n
    k = 1.0 / jnp.sqrt(jnp.float32(H))
    w_ih = jax.random.uniform(kih, (3 * H, H), jnp.float32, -k, k)
    w_hh = jax.random.uniform(khh, (3 * H, H), jnp.float32, -k, k)
    b_ih = jax.random.uniform(kbih, (3 * H,), jnp.float32, -k, k)
    b_hh = jax.random.uniform(kbhh, (3 * H,), jnp.float32, -k, k)

    # nn.Linear(H, V)
    w_out = jax.random.uniform(kWo, (V, H), jnp.float32, -k, k)
    b_out = jax.random.uniform(kbo, (V,), jnp.float32, -k, k)

    def split3(a):
        return a[0:H], a[H:2 * H], a[2 * H:3 * H]

    wir, wiz, win = split3(w_ih)
    whr, whz, whn = split3(w_hh)
    bir, biz, bin_ = split3(b_ih)
    bhr, bhz, bhn = split3(b_hh)

    def pad2(a, rows, cols):
        return jnp.pad(a, ((0, rows - a.shape[0]), (0, cols - a.shape[1])))

    def pad1(a, n):
        return jnp.pad(a, (0, n - a.shape[0]))

    # Fused gate weights so x @ W_i and h @ W_h give (B, 3*Hp) = [r | z | n].
    w_i = jnp.concatenate([pad2(wir.T, Hp, Hp), pad2(wiz.T, Hp, Hp),
                           pad2(win.T, Hp, Hp)], axis=1).astype(jnp.bfloat16)
    w_h = jnp.concatenate([pad2(whr.T, Hp, Hp), pad2(whz.T, Hp, Hp),
                           pad2(whn.T, Hp, Hp)], axis=1).astype(jnp.bfloat16)
    # Folded biases: [bir+bhr | biz+bhz | bin]; bhn kept separate (r*(..+bhn)).
    b_rzn = jnp.concatenate([pad1(bir + bhr, Hp), pad1(biz + bhz, Hp),
                             pad1(bin_, Hp)])[None, :].astype(jnp.float32)
    b_hn = pad1(bhn, Hp)[None, :].astype(jnp.float32)

    # Output projection, vocab padded with a huge negative bias (softmax mask).
    w_out_p = pad2(w_out.T, Hp, Vp).astype(jnp.bfloat16)          # (Hp, Vp)
    b_out_p = jnp.full((Vp,), _NEG_BIG, jnp.float32).at[:V].set(b_out)[None, :]

    packed = {
        "embedding": embedding,
        "w_i": w_i, "w_h": w_h,
        "b_rzn": b_rzn, "b_hn": b_hn,
        "w_out": w_out_p, "b_out": b_out_p,
    }
    raw = {"embedding": embedding, "w_ih": w_ih, "w_hh": w_hh,
           "b_ih": b_ih, "b_hh": b_hh, "w_out": w_out, "b_out": b_out}
    return packed, raw


# ---------------------------------------------------------------------------
# Forward wrapper (jitted): embedding gather + padding in JAX glue, single
# pallas_call with a vocab-tile grid, then the cheap `logits - lse` pass.
# ---------------------------------------------------------------------------
def _decoder_rnn_forward(params, input_data, hidden, enc_outputs=None):
    del enc_outputs
    V, H = params["embedding"].shape
    Hp, TILE_V, Vp = _choose_tiles(H, V)
    B = input_data.shape[1]
    Bp = _round_up(B, 8)
    num_v = Vp // TILE_V

    # Embedding lookup stays in JAX glue (padding row of the table is zero).
    emb = jnp.take(params["embedding"], input_data[0], axis=0)      # (B, H)
    emb = jnp.pad(emb.astype(jnp.float32), ((0, Bp - B), (0, Hp - H)))
    h0 = jnp.pad(hidden[0].astype(jnp.float32), ((0, Bp - B), (0, Hp - H)))

    ins = (emb, h0, params["w_i"], params["w_h"], params["b_rzn"],
           params["b_hn"], params["w_out"], params["b_out"])

    in_specs = [
        pl.BlockSpec((Bp, Hp), lambda j: (0, 0)),          # emb
        pl.BlockSpec((Bp, Hp), lambda j: (0, 0)),          # h0
        pl.BlockSpec((Hp, 3 * Hp), lambda j: (0, 0)),      # fused W_i
        pl.BlockSpec((Hp, 3 * Hp), lambda j: (0, 0)),      # fused W_h
        pl.BlockSpec((1, 3 * Hp), lambda j: (0, 0)),       # folded biases
        pl.BlockSpec((1, Hp), lambda j: (0, 0)),           # b_hn
        pl.BlockSpec((Hp, TILE_V), lambda j: (0, j)),      # w_out vocab tile
        pl.BlockSpec((1, TILE_V), lambda j: (0, j)),       # b_out vocab tile
    ]
    out_specs = (
        pl.BlockSpec((Bp, TILE_V), lambda j: (0, j)),      # logits tile
        pl.BlockSpec((Bp, 1), lambda j: (0, 0)),           # lse
        pl.BlockSpec((Bp, Hp), lambda j: (0, 0)),          # new hidden
    )
    out_shape = (
        jax.ShapeDtypeStruct((Bp, Vp), jnp.float32),
        jax.ShapeDtypeStruct((Bp, 1), jnp.float32),
        jax.ShapeDtypeStruct((Bp, Hp), jnp.float32),
    )

    bytes_accessed = (
        emb.size * 4 + h0.size * 4
        + params["w_i"].size * 2 + params["w_h"].size * 2
        + params["w_out"].size * 2
        + (params["b_rzn"].size + params["b_hn"].size + params["b_out"].size) * 4
        + (Bp * Vp + Bp + Bp * Hp) * 4
    )
    cost = pl.CostEstimate(
        flops=2 * Bp * Hp * (6 * Hp + Vp),
        transcendentals=Bp * (3 * Hp + 2 * Vp),
        bytes_accessed=int(bytes_accessed),
    )

    logits, lse, h_new = pl.pallas_call(
        _decoder_step_kernel,
        grid=(num_v,),
        in_specs=in_specs,
        out_specs=out_specs,
        out_shape=out_shape,
        scratch_shapes=[
            pltpu.VMEM((Bp, Hp), jnp.float32),   # h_new, resident across tiles
            pltpu.VMEM((Bp, 1), jnp.float32),    # running max
            pltpu.VMEM((Bp, 1), jnp.float32),    # running sum(exp)
        ],
        input_output_aliases={1: 2},             # h0 buffer reused for h_new
        compiler_params=pltpu.CompilerParams(
            dimension_semantics=("arbitrary",)),  # vocab axis carries the lse
        cost_estimate=cost,
    )(*ins)

    # Cheap second pass of the two-pass log-softmax, then strip padding.
    log_probs = (logits - lse)[:B, :V]
    return log_probs, h_new[:B, :H][None, :, :]


decoder_rnn_forward = jax.jit(_decoder_rnn_forward)


# ---------------------------------------------------------------------------
# Pure-JAX reference (mirrors the kernel's bf16 weight rounding).
# ---------------------------------------------------------------------------
def reference_forward(raw, input_data, hidden):
    H = raw["w_hh"].shape[1]
    bf = lambda a: a.astype(jnp.bfloat16).astype(jnp.float32)
    x = jnp.maximum(jnp.take(raw["embedding"], input_data[0], axis=0), 0.0)
    h = hidden[0]
    gi = bf(x) @ bf(raw["w_ih"]).T + raw["b_ih"]
    gh = bf(h) @ bf(raw["w_hh"]).T + raw["b_hh"]
    r = jax.nn.sigmoid(gi[:, :H] + gh[:, :H])
    z = jax.nn.sigmoid(gi[:, H:2 * H] + gh[:, H:2 * H])
    n = jnp.tanh(gi[:, 2 * H:] + r * gh[:, 2 * H:])
    h_new = (1.0 - z) * n + z * h
    logits = bf(h_new) @ bf(raw["w_out"]).T + raw["b_out"]
    return jax.nn.log_softmax(logits, axis=1), h_new[None, :, :]


if __name__ == "__main__":
    hidden_size = 32     # padded to 128 lanes inside the wrapper
    vocab_size = 1000    # padded to 1024 -> 2 vocab tiles of 512 (exercises
                         # the online log-sum-exp across the grid)
    batch = 5            # padded to 8 sublanes

    key = jax.random.PRNGKey(0)
    kp, kin, kh = jax.random.split(key, 3)

    params, raw = init_params(kp, hidden_size, vocab_size)

    input_data = jax.random.randint(kin, (1, batch), 0, vocab_size,
                                    dtype=jnp.int32)
    hidden = jax.random.normal(kh, (1, batch, hidden_size), dtype=jnp.float32)

    log_probs, new_hidden = decoder_rnn_forward(params, input_data, hidden, None)
    jax.block_until_ready((log_probs, new_hidden))

    assert log_probs.shape == (batch, vocab_size)
    assert new_hidden.shape == (1, batch, hidden_size)
    # log-softmax sanity: rows sum to ~1 in prob space
    assert jnp.allclose(jnp.sum(jnp.exp(log_probs), axis=1), 1.0, atol=1e-3)

    # numeric check vs a pure-JAX reference with the same bf16 weight rounding
    ref_logp, ref_hidden = reference_forward(raw, input_data, hidden)
    assert jnp.allclose(log_probs, ref_logp, atol=2e-2), (
        float(jnp.max(jnp.abs(log_probs - ref_logp))))
    assert jnp.allclose(new_hidden, ref_hidden, atol=2e-2), (
        float(jnp.max(jnp.abs(new_hidden - ref_hidden))))

    print("KERNEL_OK")
</pallas_src>

<mosaic_0001>
module attributes {stable_mosaic.version = 11 : i64} {
  func.func @_decoder_step_kernel(%arg0: i32, %arg1: memref<8x128xf32, #tpu.memory_space<vmem>>, %arg2: memref<8x128xf32, #tpu.memory_space<vmem>>, %arg3: memref<128x384xbf16, #tpu.memory_space<vmem>>, %arg4: memref<128x384xbf16, #tpu.memory_space<vmem>>, %arg5: memref<1x384xf32, #tpu.memory_space<vmem>>, %arg6: memref<1x128xf32, #tpu.memory_space<vmem>>, %arg7: memref<128x512xbf16, #tpu.memory_space<vmem>>, %arg8: memref<1x512xf32, #tpu.memory_space<vmem>>, %arg9: memref<8x512xf32, #tpu.memory_space<vmem>>, %arg10: memref<8x1xf32, #tpu.memory_space<vmem>>, %arg11: memref<8x128xf32, #tpu.memory_space<vmem>>, %arg12: memref<8x128xf32, #tpu.memory_space<vmem>>, %arg13: memref<8x1xf32, #tpu.memory_space<vmem>>, %arg14: memref<8x1xf32, #tpu.memory_space<vmem>>) attributes {dimension_semantics = [#tpu.dimension_semantics<arbitrary>], iteration_bounds = array<i64: 2>, scalar_prefetch = 0 : i64, scratch_operands = 3 : i64, tpu.core_type = #tpu.core_type<tc>, window_params = [{pipeline_mode = #tpu.pipeline_mode<synchronous>, transform_indices = @transform_0, window_bounds = array<i64: 8, 128>}, {pipeline_mode = #tpu.pipeline_mode<synchronous>, transform_indices = @transform_1, window_bounds = array<i64: 8, 128>}, {pipeline_mode = #tpu.pipeline_mode<synchronous>, transform_indices = @transform_2, window_bounds = array<i64: 128, 384>}, {pipeline_mode = #tpu.pipeline_mode<synchronous>, transform_indices = @transform_3, window_bounds = array<i64: 128, 384>}, {pipeline_mode = #tpu.pipeline_mode<synchronous>, transform_indices = @transform_4, window_bounds = array<i64: 1, 384>}, {pipeline_mode = #tpu.pipeline_mode<synchronous>, transform_indices = @transform_5, window_bounds = array<i64: 1, 128>}, {transform_indices = @transform_6, window_bounds = array<i64: 128, 512>}, {transform_indices = @transform_7, window_bounds = array<i64: 1, 512>}, {transform_indices = @transform_8, window_bounds = array<i64: 8, 512>}, {pipeline_mode = #tpu.pipeline_mode<synchronous>, transform_indices = @transform_9, window_bounds = array<i64: 8, 1>}, {pipeline_mode = #tpu.pipeline_mode<synchronous>, transform_indices = @transform_10, window_bounds = array<i64: 8, 128>}]} {
    %c0_i32 = arith.constant 0 : i32
    %0 = arith.cmpi eq, %arg0, %c0_i32 : i32
    %1 = arith.extui %0 : i1 to i32
    %c0_i32_0 = arith.constant 0 : i32
    %2 = arith.cmpi ne, %1, %c0_i32_0 : i32
    scf.if %2 {
      %c0_19 = arith.constant 0 : index
      %c0_20 = arith.constant 0 : index
      %30 = vector.load %arg1[%c0_19, %c0_20] : memref<8x128xf32, #tpu.memory_space<vmem>>, vector<8x128xf32>
      %cst_21 = arith.constant 0.000000e+00 : f32
      %31 = vector.broadcast %cst_21 : f32 to vector<8x128xf32>
      %32 = arith.maximumf %30, %31 : vector<8x128xf32>
      %33 = arith.truncf %32 : vector<8x128xf32> to vector<8x128xbf16>
      %c0_22 = arith.constant 0 : index
      %c0_23 = arith.constant 0 : index
      %34 = vector.load %arg2[%c0_22, %c0_23] : memref<8x128xf32, #tpu.memory_space<vmem>>, vector<8x128xf32>
      %c0_24 = arith.constant 0 : index
      %c0_25 = arith.constant 0 : index
      %35 = vector.load %arg3[%c0_24, %c0_25] : memref<128x384xbf16, #tpu.memory_space<vmem>>, vector<128x384xbf16>
      %cst_26 = arith.constant dense<0.000000e+00> : vector<8x384xf32>
      %36 = tpu.matmul %33, %35, %cst_26 {dimension_numbers = #tpu.dot_dimension_numbers<[1], [0], [0], [1], [0, 0, 1, 1], [], []>} : vector<8x128xbf16>, vector<128x384xbf16>, vector<8x384xf32> -> vector<8x384xf32>
      %c0_27 = arith.constant 0 : index
      %c0_28 = arith.constant 0 : index
      %37 = vector.load %arg5[%c0_27, %c0_28] : memref<1x384xf32, #tpu.memory_space<vmem>>, vector<1x384xf32>
      %38 = vector.broadcast %37 : vector<1x384xf32> to vector<8x384xf32>
      %39 = arith.addf %36, %38 : vector<8x384xf32>
      %40 = arith.truncf %34 : vector<8x128xf32> to vector<8x128xbf16>
      %c0_29 = arith.constant 0 : index
      %c0_30 = arith.constant 0 : index
      %41 = vector.load %arg4[%c0_29, %c0_30] : memref<128x384xbf16, #tpu.memory_space<vmem>>, vector<128x384xbf16>
      %cst_31 = arith.constant dense<0.000000e+00> : vector<8x384xf32>
      %42 = tpu.matmul %40, %41, %cst_31 {dimension_numbers = #tpu.dot_dimension_numbers<[1], [0], [0], [1], [0, 0, 1, 1], [], []>} : vector<8x128xbf16>, vector<128x384xbf16>, vector<8x384xf32> -> vector<8x384xf32>
      %43 = vector.extract_strided_slice %39 {offsets = [0, 0], sizes = [8, 128], strides = [1, 1]} : vector<8x384xf32> to vector<8x128xf32>
      %44 = vector.extract_strided_slice %42 {offsets = [0, 0], sizes = [8, 128], strides = [1, 1]} : vector<8x384xf32> to vector<8x128xf32>
      %45 = arith.addf %43, %44 : vector<8x128xf32>
      %46 = arith.negf %45 : vector<8x128xf32>
      %47 = math.exp %46 : vector<8x128xf32>
      %cst_32 = arith.constant 1.000000e+00 : f32
      %48 = vector.broadcast %cst_32 : f32 to vector<8x128xf32>
      %49 = arith.addf %48, %47 : vector<8x128xf32>
      %50 = arith.divf %48, %49 : vector<8x128xf32>
      %51 = vector.extract_strided_slice %39 {offsets = [0, 128], sizes = [8, 128], strides = [1, 1]} : vector<8x384xf32> to vector<8x128xf32>
      %52 = vector.extract_strided_slice %42 {offsets = [0, 128], sizes = [8, 128], strides = [1, 1]} : vector<8x384xf32> to vector<8x128xf32>
      %53 = arith.addf %51, %52 : vector<8x128xf32>
      %54 = arith.negf %53 : vector<8x128xf32>
      %55 = math.exp %54 : vector<8x128xf32>
      %cst_33 = arith.constant 1.000000e+00 : f32
      %56 = vector.broadcast %cst_33 : f32 to vector<8x128xf32>
      %57 = arith.addf %56, %55 : vector<8x128xf32>
      %58 = arith.divf %56, %57 : vector<8x128xf32>
      %59 = vector.extract_strided_slice %39 {offsets = [0, 256], sizes = [8, 128], strides = [1, 1]} : vector<8x384xf32> to vector<8x128xf32>
      %60 = vector.extract_strided_slice %42 {offsets = [0, 256], sizes = [8, 128], strides = [1, 1]} : vector<8x384xf32> to vector<8x128xf32>
      %c0_34 = arith.constant 0 : index
      %c0_35 = arith.constant 0 : index
      %61 = vector.load %arg6[%c0_34, %c0_35] : memref<1x128xf32, #tpu.memory_space<vmem>>, vector<1x128xf32>
      %62 = vector.broadcast %61 : vector<1x128xf32> to vector<8x128xf32>
      %63 = arith.addf %60, %62 : vector<8x128xf32>
      %64 = arith.mulf %50, %63 : vector<8x128xf32>
      %65 = arith.addf %59, %64 : vector<8x128xf32>
      %66 = math.tanh %65 : vector<8x128xf32>
      %cst_36 = arith.constant 1.000000e+00 : f32
      %67 = vector.broadcast %cst_36 : f32 to vector<8x128xf32>
      %68 = arith.subf %67, %58 : vector<8x128xf32>
      %69 = arith.mulf %68, %66 : vector<8x128xf32>
      %70 = arith.mulf %58, %34 : vector<8x128xf32>
      %71 = arith.addf %69, %70 : vector<8x128xf32>
      %c0_37 = arith.constant 0 : index
      %c0_38 = arith.constant 0 : index
      %72 = vector.load %arg12[%c0_37, %c0_38] : memref<8x128xf32, #tpu.memory_space<vmem>>, vector<8x128xf32>
      tpu.vector_store %arg12[%c0_37, %c0_38], %71 {strides = array<i32>} : memref<8x128xf32, #tpu.memory_space<vmem>>, vector<8x128xf32>,
      %c0_39 = arith.constant 0 : index
      %c0_40 = arith.constant 0 : index
      %73 = vector.load %arg11[%c0_39, %c0_40] : memref<8x128xf32, #tpu.memory_space<vmem>>, vector<8x128xf32>
      tpu.vector_store %arg11[%c0_39, %c0_40], %71 {strides = array<i32>} : memref<8x128xf32, #tpu.memory_space<vmem>>, vector<8x128xf32>,
      %cst_41 = arith.constant -1.000000e+30 : f32
      %74 = vector.broadcast %cst_41 : f32 to vector<8x1xf32>
      %c0_42 = arith.constant 0 : index
      %c0_43 = arith.constant 0 : index
      %75 = vector.load %arg13[%c0_42, %c0_43] : memref<8x1xf32, #tpu.memory_space<vmem>>, vector<8x1xf32>
      tpu.vector_store %arg13[%c0_42, %c0_43], %74 {strides = array<i32>} : memref<8x1xf32, #tpu.memory_space<vmem>>, vector<8x1xf32>,
      %cst_44 = arith.constant 0.000000e+00 : f32
      %76 = vector.broadcast %cst_44 : f32 to vector<8x1xf32>
      %c0_45 = arith.constant 0 : index
      %c0_46 = arith.constant 0 : index
      %77 = vector.load %arg14[%c0_45, %c0_46] : memref<8x1xf32, #tpu.memory_space<vmem>>, vector<8x1xf32>
      tpu.vector_store %arg14[%c0_45, %c0_46], %76 {strides = array<i32>} : memref<8x1xf32, #tpu.memory_space<vmem>>, vector<8x1xf32>,
    } else {
    }
    %c0 = arith.constant 0 : index
    %c0_1 = arith.constant 0 : index
    %3 = vector.load %arg12[%c0, %c0_1] : memref<8x128xf32, #tpu.memory_space<vmem>>, vector<8x128xf32>
    %4 = arith.truncf %3 : vector<8x128xf32> to vector<8x128xbf16>
    %c0_2 = arith.constant 0 : index
    %c0_3 = arith.constant 0 : index
    %5 = vector.load %arg7[%c0_2, %c0_3] : memref<128x512xbf16, #tpu.memory_space<vmem>>, vector<128x512xbf16>
    %cst = arith.constant dense<0.000000e+00> : vector<8x512xf32>
    %6 = tpu.matmul %4, %5, %cst {dimension_numbers = #tpu.dot_dimension_numbers<[1], [0], [0], [1], [0, 0, 1, 1], [], []>} : vector<8x128xbf16>, vector<128x512xbf16>, vector<8x512xf32> -> vector<8x512xf32>
    %c0_4 = arith.constant 0 : index
    %c0_5 = arith.constant 0 : index
    %7 = vector.load %arg8[%c0_4, %c0_5] : memref<1x512xf32, #tpu.memory_space<vmem>>, vector<1x512xf32>
    %8 = vector.broadcast %7 : vector<1x512xf32> to vector<8x512xf32>
    %9 = arith.addf %6, %8 : vector<8x512xf32>
    %c0_6 = arith.constant 0 : index
    %c0_7 = arith.constant 0 : index
    %10 = vector.load %arg9[%c0_6, %c0_7] : memref<8x512xf32, #tpu.memory_space<vmem>>, vector<8x512xf32>
    tpu.vector_store %arg9[%c0_6, %c0_7], %9 {strides = array<i32>} : memref<8x512xf32, #tpu.memory_space<vmem>>, vector<8x512xf32>,
    %c0_8 = arith.constant 0 : index
    %c0_9 = arith.constant 0 : index
    %11 = vector.load %arg13[%c0_8, %c0_9] : memref<8x1xf32, #tpu.memory_space<vmem>>, vector<8x1xf32>
    %cst_10 = arith.constant dense<0xFF800000> : vector<8xf32>
    %12 = vector.multi_reduction <maximumf>, %9, %cst_10 [1] : vector<8x512xf32> to vector<8xf32>
    %13 = vector.shape_cast %12 : vector<8xf32> to vector<8x1xf32>
    %14 = arith.maximumf %11, %13 : vector<8x1xf32>
    %c0_11 = arith.constant 0 : index
    %c0_12 = arith.constant 0 : index
    %15 = vector.load %arg14[%c0_11, %c0_12] : memref<8x1xf32, #tpu.memory_space<vmem>>, vector<8x1xf32>
    %16 = arith.subf %11, %14 : vector<8x1xf32>
    %17 = math.exp %16 : vector<8x1xf32>
    %18 = arith.mulf %15, %17 : vector<8x1xf32>
    %19 = vector.broadcast %14 : vector<8x1xf32> to vector<8x512xf32>
    %20 = arith.subf %9, %19 : vector<8x512xf32>
    %21 = math.exp %20 : vector<8x512xf32>
    %cst_13 = arith.constant dense<0.000000e+00> : vector<8xf32>
    %22 = vector.multi_reduction <add>, %21, %cst_13 [1] : vector<8x512xf32> to vector<8xf32>
    %23 = vector.shape_cast %22 : vector<8xf32> to vector<8x1xf32>
    %24 = arith.addf %18, %23 : vector<8x1xf32>
    %c0_14 = arith.constant 0 : index
    %c0_15 = arith.constant 0 : index
    %25 = vector.load %arg14[%c0_14, %c0_15] : memref<8x1xf32, #tpu.memory_space<vmem>>, vector<8x1xf32>
    tpu.vector_store %arg14[%c0_14, %c0_15], %24 {strides = array<i32>} : memref<8x1xf32, #tpu.memory_space<vmem>>, vector<8x1xf32>,
    %c0_16 = arith.constant 0 : index
    %c0_17 = arith.constant 0 : index
    %26 = vector.load %arg13[%c0_16, %c0_17] : memref<8x1xf32, #tpu.memory_space<vmem>>, vector<8x1xf32>
    tpu.vector_store %arg13[%c0_16, %c0_17], %14 {strides = array<i32>} : memref<8x1xf32, #tpu.memory_space<vmem>>, vector<8x1xf32>,
    %c1_i32 = arith.constant 1 : i32
    %27 = arith.cmpi eq, %arg0, %c1_i32 : i32
    %28 = arith.extui %27 : i1 to i32
    %c0_i32_18 = arith.constant 0 : i32
    %29 = arith.cmpi ne, %28, %c0_i32_18 : i32
    scf.if %29 {
      %c0_19 = arith.constant 0 : index
      %c0_20 = arith.constant 0 : index
      %30 = vector.load %arg13[%c0_19, %c0_20] : memref<8x1xf32, #tpu.memory_space<vmem>>, vector<8x1xf32>
      %c0_21 = arith.constant 0 : index
      %c0_22 = arith.constant 0 : index
      %31 = vector.load %arg14[%c0_21, %c0_22] : memref<8x1xf32, #tpu.memory_space<vmem>>, vector<8x1xf32>
      %32 = math.log %31 : vector<8x1xf32>
      %33 = arith.addf %30, %32 : vector<8x1xf32>
      %c0_23 = arith.constant 0 : index
      %c0_24 = arith.constant 0 : index
      %34 = vector.load %arg10[%c0_23, %c0_24] : memref<8x1xf32, #tpu.memory_space<vmem>>, vector<8x1xf32>
      tpu.vector_store %arg10[%c0_23, %c0_24], %33 {strides = array<i32>} : memref<8x1xf32, #tpu.memory_space<vmem>>, vector<8x1xf32>,
    } else {
    }
    return
  }
  func.func @transform_0(%arg0: i32) -> (i32, i32) {
    %c0_i32 = arith.constant 0 : i32
    %c0_i32_0 = arith.constant 0 : i32
    %c0_i32_1 = arith.constant 0 : i32
    return %c0_i32, %c0_i32_0 : i32, i32
  }
  func.func @transform_1(%arg0: i32) -> (i32, i32) {
    %c0_i32 = arith.constant 0 : i32
    %c0_i32_0 = arith.constant 0 : i32
    %c0_i32_1 = arith.constant 0 : i32
    return %c0_i32, %c0_i32_0 : i32, i32
  }
  func.func @transform_2(%arg0: i32) -> (i32, i32) {
    %c0_i32 = arith.constant 0 : i32
    %c0_i32_0 = arith.constant 0 : i32
    %c0_i32_1 = arith.constant 0 : i32
    return %c0_i32, %c0_i32_0 : i32, i32
  }
  func.func @transform_3(%arg0: i32) -> (i32, i32) {
    %c0_i32 = arith.constant 0 : i32
    %c0_i32_0 = arith.constant 0 : i32
    %c0_i32_1 = arith.constant 0 : i32
    return %c0_i32, %c0_i32_0 : i32, i32
  }
  func.func @transform_4(%arg0: i32) -> (i32, i32) {
    %c0_i32 = arith.constant 0 : i32
    %c0_i32_0 = arith.constant 0 : i32
    %c0_i32_1 = arith.constant 0 : i32
    return %c0_i32, %c0_i32_0 : i32, i32
  }
  func.func @transform_5(%arg0: i32) -> (i32, i32) {
    %c0_i32 = arith.constant 0 : i32
    %c0_i32_0 = arith.constant 0 : i32
    %c0_i32_1 = arith.constant 0 : i32
    return %c0_i32, %c0_i32_0 : i32, i32
  }
  func.func @transform_6(%arg0: i32) -> (i32, i32) {
    %c0_i32 = arith.constant 0 : i32
    %c0_i32_0 = arith.constant 0 : i32
    return %c0_i32, %arg0 : i32, i32
  }
  func.func @transform_7(%arg0: i32) -> (i32, i32) {
    %c0_i32 = arith.constant 0 : i32
    %c0_i32_0 = arith.constant 0 : i32
    return %c0_i32, %arg0 : i32, i32
  }
  func.func @transform_8(%arg0: i32) -> (i32, i32) {
    %c0_i32 = arith.constant 0 : i32
    %c0_i32_0 = arith.constant 0 : i32
    return %c0_i32, %arg0 : i32, i32
  }
  func.func @transform_9(%arg0: i32) -> (i32, i32) {
    %c0_i32 = arith.constant 0 : i32
    %c0_i32_0 = arith.constant 0 : i32
    %c0_i32_1 = arith.constant 0 : i32
    return %c0_i32, %c0_i32_0 : i32, i32
  }
  func.func @transform_10(%arg0: i32) -> (i32, i32) {
    %c0_i32 = arith.constant 0 : i32
    %c0_i32_0 = arith.constant 0 : i32
    %c0_i32_1 = arith.constant 0 : i32
    return %c0_i32, %c0_i32_0 : i32, i32
  }
}

</mosaic_0001>

<llo_original>
// kernel: _decoder_rnn_forward.1
$region0: #{_decoder_rnn_forward.1}
  #allocation0 [shape = 'u32[]', space=smem, size = 0x4, offset = 0x4, fixed_abs, tag = 'smem constant byte address 0x4 - core index']
  #allocation1 [shape = 'u32[144,128]{1,0:T(1,128)}', space=vmem, size = 0x12000, scoped, tag = 'internal scratch']
  #allocation2 [shape = 'f32[8,128]{1,0:T(8,128)}', space=vmem, size = 0x1000, scoped, tag = 'scratch operand']
  #allocation3 [shape = 'f32[8,1]{1,0:T(8,128)}', space=vmem, size = 0x1000, scoped, tag = 'scratch operand']
  #allocation4 [shape = 'f32[8,1]{1,0:T(8,128)}', space=vmem, size = 0x1000, scoped, tag = 'scratch operand']
  %s0 = inlined_call_operand.vmem [shape: f32[8,128], index: 0, kind: input, shape index: {}]
  %s1 = inlined_call_operand.vmem [shape: f32[8,128], index: 1, kind: input, shape index: {}, may-alias: {1,10}]
  %s2 = inlined_call_operand.vmem [shape: bf16[128,384], index: 2, kind: input, shape index: {}]
  %s3 = inlined_call_operand.vmem [shape: bf16[128,384], index: 3, kind: input, shape index: {}]
  %s4 = inlined_call_operand.vmem [shape: f32[1,384], index: 4, kind: input, shape index: {}]
  %s5 = inlined_call_operand.vmem [shape: f32[1,128], index: 5, kind: input, shape index: {}]
  %s6 = inlined_call_operand.vmem [shape: bf16[128,1024], index: 6, kind: input, shape index: {}]
  %s7 = inlined_call_operand.vmem [shape: f32[1,1024], index: 7, kind: input, shape index: {}]
  %s8 = inlined_call_operand.vmem [shape: f32[8,1024], index: 8, kind: output, shape index: {0}]
  %s9 = inlined_call_operand.vmem [shape: f32[8,1], index: 9, kind: output, shape index: {1}]
  %s10 = inlined_call_operand.vmem [shape: f32[8,128], index: 10, kind: output, shape index: {2}, may-alias: {1,10}]
  %11 = xla_tuple %s8, %s9, %s10
  %s12 = sld [smem:[#allocation0]]
  $region112: #{_decoder_rnn_forward.1} parent=0
    _
  %s14 = ssub.s32 1, %s12
  %s15 = scalar_select 0, %s14, %s12
  $region1: #{_decoder_rnn_forward.1} parent=0
    #allocation5 [shape = 'u8[262144]{0}', space=vmem, size = 0x40000, scoped, tag = 'input window, operand 6']
    loop: start=0, step=1, limit=4
    $region2: #{_decoder_rnn_forward.1} parent=1 // loop_pre_header
      _
    $region3: #{_decoder_rnn_forward.1} parent=1 // loop_header
      %s17 = sphi 0, %s21
      %p18 = scmp.ge.s32.totalorder %s17, 4
      %s25 = sphi 0, %s25
      %s27 = sphi 0, %s25
      %s28 = sphi 0, %s27
      %s42 = sphi 0, %s28
      %s46 = sphi 0, %s46
      %s48 = sphi 0, %s46
      %s49 = sphi 0, %s48
      %s63 = sphi 0, %s49
      %s67 = sphi 0, %s67
      %s69 = sphi 0, %s67
      %s70 = sphi 0, %s69
      %s84 = sphi 0, %s70
      %s88 = sphi 0, %s88
      %s90 = sphi 0, %s88
      %s91 = sphi 0, %s90
      %s105 = sphi 0, %s91
      %s109 = sphi 0, %s109
      %s111 = sphi 0, %s109
      %s112 = sphi 0, %s111
      %s126 = sphi 0, %s112
      %s130 = sphi 0, %s130
      %s132 = sphi 0, %s130
      %s133 = sphi 0, %s132
      %s147 = sphi 0, %s133
      %s153 = sphi 0, %s155
      %s156 = sphi 0, %s153
      %s157 = sphi 0, %s156
      %s173 = sphi 0, %s157
      %s179 = sphi 0, %s181
      %s182 = sphi 0, %s179
      %s183 = sphi 0, %s182
      %s199 = sphi 0, %s183
      %s205 = sphi 0, %s207
      %s208 = sphi 0, %s205
      %s209 = sphi 0, %s208
      %s225 = sphi 0, %s209
      %s229 = sphi 0, %s229
      %s231 = sphi 0, %s229
      %s232 = sphi 0, %s231
      %s246 = sphi 0, %s232
      %s250 = sphi 0, %s250
      %s252 = sphi 0, %s250
      %s253 = sphi 0, %s252
      %s267 = sphi 0, %s253
    $region4: #{_decoder_rnn_forward.1} parent=1 // loop_header_branch
      %20 = sbr.rel (%p18) target = $region8
    $region5: #{_decoder_rnn_forward.1} parent=1 // loop_body
      %s22 = ssub.s32 %s17, 1
      %s23 = ssub.s32 %s17, 2
      %s24 = sadd.s32 %s17, 1
      %s26 = sadd.s32 %s25, 1
      %p29 = scmp.eq.s32.totalorder %s17, 1
      %p30 = scmp.ne.s32.totalorder %s25, %s27
      %p31 = scmp.eq.s32.totalorder %s17, 0
      %p32 = por %p30, %p31
      %p33 = scmp.ne.s32.totalorder %s25, %s27
      %p34 = scmp.eq.s32.totalorder %s22, 1
      %p35 = por %p33, %p34
      %p36 = scmp.ne.s32.totalorder %s27, %s28
      %p37 = scmp.eq.s32.totalorder %s22, 0
      %p38 = por %p36, %p37
      %p39 = scmp.ne.s32.totalorder %s27, %s28
      %p40 = scmp.eq.s32.totalorder %s23, 1
      %p41 = por %p39, %p40
      %p43 = scmp.ne.s32.totalorder %s28, %s42
      %p44 = scmp.eq.s32.totalorder %s23, 0
      %p45 = por %p43, %p44
      %s47 = sadd.s32 %s46, 1
      %p50 = scmp.eq.s32.totalorder %s17, 1
      %p51 = scmp.ne.s32.totalorder %s46, %s48
      %p52 = scmp.eq.s32.totalorder %s17, 0
      %p53 = por %p51, %p52
      %p54 = scmp.ne.s32.totalorder %s46, %s48
      %p55 = scmp.eq.s32.totalorder %s22, 1
      %p56 = por %p54, %p55
      %p57 = scmp.ne.s32.totalorder %s48, %s49
      %p58 = scmp.eq.s32.totalorder %s22, 0
      %p59 = por %p57, %p58
      %p60 = scmp.ne.s32.totalorder %s48, %s49
      %p61 = scmp.eq.s32.totalorder %s23, 1
      %p62 = por %p60, %p61
      %p64 = scmp.ne.s32.totalorder %s49, %s63
      %p65 = scmp.eq.s32.totalorder %s23, 0
      %p66 = por %p64, %p65
      %s68 = sadd.s32 %s67, 1
      %p71 = scmp.eq.s32.totalorder %s17, 1
      %p72 = scmp.ne.s32.totalorder %s67, %s69
      %p73 = scmp.eq.s32.totalorder %s17, 0
      %p74 = por %p72, %p73
      %p75 = scmp.ne.s32.totalorder %s67, %s69
      %p76 = scmp.eq.s32.totalorder %s22, 1
      %p77 = por %p75, %p76
      %p78 = scmp.ne.s32.totalorder %s69, %s70
      %p79 = scmp.eq.s32.totalorder %s22, 0
      %p80 = por %p78, %p79
      %p81 = scmp.ne.s32.totalorder %s69, %s70
      %p82 = scmp.eq.s32.totalorder %s23, 1
      %p83 = por %p81, %p82
      %p85 = scmp.ne.s32.totalorder %s70, %s84
      %p86 = scmp.eq.s32.totalorder %s23, 0
      %p87 = por %p85, %p86
      %s89 = sadd.s32 %s88, 1
      %p92 = scmp.eq.s32.totalorder %s17, 1
      %p93 = scmp.ne.s32.totalorder %s88, %s90
      %p94 = scmp.eq.s32.totalorder %s17, 0
      %p95 = por %p93, %p94
      %p96 = scmp.ne.s32.totalorder %s88, %s90
      %p97 = scmp.eq.s32.totalorder %s22, 1
      %p98 = por %p96, %p97
      %p99 = scmp.ne.s32.totalorder %s90, %s91
      %p100 = scmp.eq.s32.totalorder %s22, 0
      %p101 = por %p99, %p100
      %p102 = scmp.ne.s32.totalorder %s90, %s91
      %p103 = scmp.eq.s32.totalorder %s23, 1
      %p104 = por %p102, %p103
      %p106 = scmp.ne.s32.totalorder %s91, %s105
      %p107 = scmp.eq.s32.totalorder %s23, 0
      %p108 = por %p106, %p107
      %s110 = sadd.s32 %s109, 1
      %p113 = scmp.eq.s32.totalorder %s17, 1
      %p114 = scmp.ne.s32.totalorder %s109, %s111
      %p115 = scmp.eq.s32.totalorder %s17, 0
      %p116 = por %p114, %p115
      %p117 = scmp.ne.s32.totalorder %s109, %s111
      %p118 = scmp.eq.s32.totalorder %s22, 1
      %p119 = por %p117, %p118
      %p120 = scmp.ne.s32.totalorder %s111, %s112
      %p121 = scmp.eq.s32.totalorder %s22, 0
      %p122 = por %p120, %p121
      %p123 = scmp.ne.s32.totalorder %s111, %s112
      %p124 = scmp.eq.s32.totalorder %s23, 1
      %p125 = por %p123, %p124
      %p127 = scmp.ne.s32.totalorder %s112, %s126
      %p128 = scmp.eq.s32.totalorder %s23, 0
      %p129 = por %p127, %p128
      %s131 = sadd.s32 %s130, 1
      %p134 = scmp.eq.s32.totalorder %s17, 1
      %p135 = scmp.ne.s32.totalorder %s130, %s132
      %p136 = scmp.eq.s32.totalorder %s17, 0
      %p137 = por %p135, %p136
      %p138 = scmp.ne.s32.totalorder %s130, %s132
      %p139 = scmp.eq.s32.totalorder %s22, 1
      %p140 = por %p138, %p139
      %p141 = scmp.ne.s32.totalorder %s132, %s133
      %p142 = scmp.eq.s32.totalorder %s22, 0
      %p143 = por %p141, %p142
      %p144 = scmp.ne.s32.totalorder %s132, %s133
      %p145 = scmp.eq.s32.totalorder %s23, 1
      %p146 = por %p144, %p145
      %p148 = scmp.ne.s32.totalorder %s133, %s147
      %p149 = scmp.eq.s32.totalorder %s23, 0
      %p150 = por %p148, %p149
      %s151 = ssub.s32 %s17, %s24
      %p152 = scmp.eq.s32.totalorder %s151, 0
      %s154 = sadd.s32 %s153, 1
      %s155 = scalar_select %p152, %s153, %s154
      %p158 = pneg %p152
      %p159 = scmp.eq.s32.totalorder %s17, 1
      %p160 = por %p158, %p159
      %p161 = scmp.ne.s32.totalorder %s153, %s156
      %p162 = scmp.eq.s32.totalorder %s17, 0
      %p163 = por %p161, %p162
      %p164 = scmp.ne.s32.totalorder %s153, %s156
      %p165 = scmp.eq.s32.totalorder %s22, 1
      %p166 = por %p164, %p165
      %p167 = scmp.ne.s32.totalorder %s156, %s157
      %p168 = scmp.eq.s32.totalorder %s22, 0
      %p169 = por %p167, %p168
      %p170 = scmp.ne.s32.totalorder %s156, %s157
      %p171 = scmp.eq.s32.totalorder %s23, 1
      %p172 = por %p170, %p171
      %p174 = scmp.ne.s32.totalorder %s157, %s173
      %p175 = scmp.eq.s32.totalorder %s23, 0
      %p176 = por %p174, %p175
      %s177 = ssub.s32 %s17, %s24
      %p178 = scmp.eq.s32.totalorder %s177, 0
      %s180 = sadd.s32 %s179, 1
      %s181 = scalar_select %p178, %s179, %s180
      %p184 = pneg %p178
      %p185 = scmp.eq.s32.totalorder %s17, 1
      %p186 = por %p184, %p185
      %p187 = scmp.ne.s32.totalorder %s179, %s182
      %p188 = scmp.eq.s32.totalorder %s17, 0
      %p189 = por %p187, %p188
      %p190 = scmp.ne.s32.totalorder %s179, %s182
      %p191 = scmp.eq.s32.totalorder %s22, 1
      %p192 = por %p190, %p191
      %p193 = scmp.ne.s32.totalorder %s182, %s183
      %p194 = scmp.eq.s32.totalorder %s22, 0
      %p195 = por %p193, %p194
      %p196 = scmp.ne.s32.totalorder %s182, %s183
      %p197 = scmp.eq.s32.totalorder %s23, 1
      %p198 = por %p196, %p197
      %p200 = scmp.ne.s32.totalorder %s183, %s199
      %p201 = scmp.eq.s32.totalorder %s23, 0
      %p202 = por %p200, %p201
      %s203 = ssub.s32 %s17, %s24
      %p204 = scmp.eq.s32.totalorder %s203, 0
      %s206 = sadd.s32 %s205, 1
      %s207 = scalar_select %p204, %s205, %s206
      %p210 = pneg %p204
      %p211 = scmp.eq.s32.totalorder %s17, 1
      %p212 = por %p210, %p211
      %p213 = scmp.ne.s32.totalorder %s205, %s208
      %p214 = scmp.eq.s32.totalorder %s17, 0
      %p215 = por %p213, %p214
      %p216 = scmp.ne.s32.totalorder %s205, %s208
      %p217 = scmp.eq.s32.totalorder %s22, 1
      %p218 = por %p216, %p217
      %p219 = scmp.ne.s32.totalorder %s208, %s209
      %p220 = scmp.eq.s32.totalorder %s22, 0
      %p221 = por %p219, %p220
      %p222 = scmp.ne.s32.totalorder %s208, %s209
      %p223 = scmp.eq.s32.totalorder %s23, 1
      %p224 = por %p222, %p223
      %p226 = scmp.ne.s32.totalorder %s209, %s225
      %p227 = scmp.eq.s32.totalorder %s23, 0
      %p228 = por %p226, %p227
      %s230 = sadd.s32 %s229, 1
      %p233 = scmp.eq.s32.totalorder %s17, 1
      %p234 = scmp.ne.s32.totalorder %s229, %s231
      %p235 = scmp.eq.s32.totalorder %s17, 0
      %p236 = por %p234, %p235
      %p237 = scmp.ne.s32.totalorder %s229, %s231
      %p238 = scmp.eq.s32.totalorder %s22, 1
      %p239 = por %p237, %p238
      %p240 = scmp.ne.s32.totalorder %s231, %s232
      %p241 = scmp.eq.s32.totalorder %s22, 0
      %p242 = por %p240, %p241
      %p243 = scmp.ne.s32.totalorder %s231, %s232
      %p244 = scmp.eq.s32.totalorder %s23, 1
      %p245 = por %p243, %p244
      %p247 = scmp.ne.s32.totalorder %s232, %s246
      %p248 = scmp.eq.s32.totalorder %s23, 0
      %p249 = por %p247, %p248
      %s251 = sadd.s32 %s250, 1
      %p254 = scmp.eq.s32.totalorder %s17, 1
      %p255 = scmp.ne.s32.totalorder %s250, %s252
      %p256 = scmp.eq.s32.totalorder %s17, 0
      %p257 = por %p255, %p256
      %p258 = scmp.ne.s32.totalorder %s250, %s252
      %p259 = scmp.eq.s32.totalorder %s22, 1
      %p260 = por %p258, %p259
      %p261 = scmp.ne.s32.totalorder %s252, %s253
      %p262 = scmp.eq.s32.totalorder %s22, 0
      %p263 = por %p261, %p262
      %p264 = scmp.ne.s32.totalorder %s252, %s253
      %p265 = scmp.eq.s32.totalorder %s23, 1
      %p266 = por %p264, %p265
      %p268 = scmp.ne.s32.totalorder %s253, %s267
      %p269 = scmp.eq.s32.totalorder %s23, 0
      %p270 = por %p268, %p269
      %p271 = scmp.le.s32.totalorder 1, %s17
      %p272 = scmp.lt.s32.totalorder %s17, 3
      %p273 = pnand %p271, %p272
      %p274 = pneg %p273
      // Predicated region
      $region9: #{_decoder_rnn_forward.1} parent=5 // pred_check
        _
      $region10: #{_decoder_rnn_forward.1} parent=5 // pred_check_branch
        %276 = sbr.rel (%p273) target = $region12
      $region11: #{_decoder_rnn_forward.1} parent=5 // pred_region
        %s277 = ssub.s32 %s17, 1
        // Predicated region
        $region13: #{_decoder_rnn_forward.1} parent=11 // pred_check
          %p278 = pneg %p38
        $region14: #{_decoder_rnn_forward.1} parent=11 // pred_check_branch
          %280 = sbr.rel (%p278) target = $region16
        $region15: #{_decoder_rnn_forward.1} parent=11 // pred_region
          _
        $region16: #{_decoder_rnn_forward.1} parent=11 // pred_fallthru
          _
        // Predicated region
        $region17: #{_decoder_rnn_forward.1} parent=11 // pred_check
          %p281 = pneg %p59
        $region18: #{_decoder_rnn_forward.1} parent=11 // pred_check_branch
          %283 = sbr.rel (%p281) target = $region20
        $region19: #{_decoder_rnn_forward.1} parent=11 // pred_region
          _
        $region20: #{_decoder_rnn_forward.1} parent=11 // pred_fallthru
          _
        // Predicated region
        $region21: #{_decoder_rnn_forward.1} parent=11 // pred_check
          %p284 = pneg %p80
        $region22: #{_decoder_rnn_forward.1} parent=11 // pred_check_branch
          %286 = sbr.rel (%p284) target = $region24
        $region23: #{_decoder_rnn_forward.1} parent=11 // pred_region
          _
        $region24: #{_decoder_rnn_forward.1} parent=11 // pred_fallthru
          _
        // Predicated region
        $region25: #{_decoder_rnn_forward.1} parent=11 // pred_check
          %p287 = pneg %p101
        $region26: #{_decoder_rnn_forward.1} parent=11 // pred_check_branch
          %289 = sbr.rel (%p287) target = $region28
        $region27: #{_decoder_rnn_forward.1} parent=11 // pred_region
          _
        $region28: #{_decoder_rnn_forward.1} parent=11 // pred_fallthru
          _
        // Predicated region
        $region29: #{_decoder_rnn_forward.1} parent=11 // pred_check
          %p290 = pneg %p122
        $region30: #{_decoder_rnn_forward.1} parent=11 // pred_check_branch
          %292 = sbr.rel (%p290) target = $region32
        $region31: #{_decoder_rnn_forward.1} parent=11 // pred_region
          _
        $region32: #{_decoder_rnn_forward.1} parent=11 // pred_fallthru
          _
        // Predicated region
        $region33: #{_decoder_rnn_forward.1} parent=11 // pred_check
          %p293 = pneg %p143
        $region34: #{_decoder_rnn_forward.1} parent=11 // pred_check_branch
          %295 = sbr.rel (%p293) target = $region36
        $region35: #{_decoder_rnn_forward.1} parent=11 // pred_region
          _
        $region36: #{_decoder_rnn_forward.1} parent=11 // pred_fallthru
          _
      $region12: #{_decoder_rnn_forward.1} parent=5 // pred_fallthru
        _
      %p296 = scmp.lt.s32.totalorder %s17, 2
      // Predicated region
      $region37: #{_decoder_rnn_forward.1} parent=5 // pred_check
        %p297 = pneg %p296
      $region38: #{_decoder_rnn_forward.1} parent=5 // pred_check_branch
        %299 = sbr.rel (%p297) target = $region40
      $region39: #{_decoder_rnn_forward.1} parent=5 // pred_region
        // Predicated region
        $region41: #{_decoder_rnn_forward.1} parent=39 // pred_check
          %p300 = pneg %p163
        $region42: #{_decoder_rnn_forward.1} parent=39 // pred_check_branch
          %302 = sbr.rel (%p300) target = $region44
        $region43: #{_decoder_rnn_forward.1} parent=39 // pred_region
          %s303 = sand.u32 %s153, 1
          %s304 = sand.u32 %s153, 1
          %s305 = smul.addr %s304, 256
          %s306 = scalar_lea.vmem [#allocation5], %s305
          %s307 = smul.u32 4, %s17
          %s308 = smul.addr %s307, 4
          %s309 = scalar_lea.vmem %s6, %s308
          // Predicated region
          $region45: #{_decoder_rnn_forward.1} parent=43 // pred_check
            _
          $region46: #{_decoder_rnn_forward.1} parent=43 // pred_check_branch
            %311 = sbr.rel (0) target = $region48
          $region47: #{_decoder_rnn_forward.1} parent=43 // pred_region
            // Predicated region
            $region49: #{_decoder_rnn_forward.1} parent=47 // pred_check
              _
            $region50: #{_decoder_rnn_forward.1} parent=47 // pred_check_branch
              %313 = sbr.rel (0) target = $region52
            $region51: #{_decoder_rnn_forward.1} parent=47 // pred_region
              loop: start=0, step=1, limit=1
              $region53: #{_decoder_rnn_forward.1} parent=51 // loop_pre_header
                _
              $region54: #{_decoder_rnn_forward.1} parent=51 // loop_header
                %s315 = sphi 0, %s319
                %p316 = scmp.ge.s32.totalorder %s315, 1
                %s320 = sphi %s309, %s309
                %s321 = sphi %s306, %s306
              $region55: #{_decoder_rnn_forward.1} parent=51 // loop_header_branch
                %318 = sbr.rel (%p316) target = $region59
              $region56: #{_decoder_rnn_forward.1} parent=51 // loop_body
                %v322 = vld [vmem:[%s320] sm:$0xff]
                %323 = vst [vmem:[%s321] sm:$0xff] %v322
                %v324 = vld [vmem:[%s320 + $0x8] sm:$0xff]
                %325 = vst [vmem:[%s321 + $0x8] sm:$0xff] %v324
                %v326 = vld [vmem:[%s320 + $0x20] sm:$0xff]
                %327 = vst [vmem:[%s321 + $0x10] sm:$0xff] %v326
                %v328 = vld [vmem:[%s320 + $0x28] sm:$0xff]
                %329 = vst [vmem:[%s321 + $0x18] sm:$0xff] %v328
                %v330 = vld [vmem:[%s320 + $0x40] sm:$0xff]
                %331 = vst [vmem:[%s321 + $0x20] sm:$0xff] %v330
                %v332 = vld [vmem:[%s320 + $0x48] sm:$0xff]
                %333 = vst [vmem:[%s321 + $0x28] sm:$0xff] %v332
                %v334 = vld [vmem:[%s320 + $0x60] sm:$0xff]
                %335 = vst [vmem:[%s321 + $0x30] sm:$0xff] %v334
                %v336 = vld [vmem:[%s320 + $0x68] sm:$0xff]
                %337 = vst [vmem:[%s321 + $0x38] sm:$0xff] %v336
                %v338 = vld [vmem:[%s320 + $0x80] sm:$0xff]
                %339 = vst [vmem:[%s321 + $0x40] sm:$0xff] %v338
                %v340 = vld [vmem:[%s320 + $0x88] sm:$0xff]
                %341 = vst [vmem:[%s321 + $0x48] sm:$0xff] %v340
                %v342 = vld [vmem:[%s320 + $0xa0] sm:$0xff]
                %343 = vst [vmem:[%s321 + $0x50] sm:$0xff] %v342
                %v344 = vld [vmem:[%s320 + $0xa8] sm:$0xff]
                %345 = vst [vmem:[%s321 + $0x58] sm:$0xff] %v344
                %v346 = vld [vmem:[%s320 + $0xc0] sm:$0xff]
                %347 = vst [vmem:[%s321 + $0x60] sm:$0xff] %v346
                %v348 = vld [vmem:[%s320 + $0xc8] sm:$0xff]
                %349 = vst [vmem:[%s321 + $0x68] sm:$0xff] %v348
                %v350 = vld [vmem:[%s320 + $0xe0] sm:$0xff]
                %351 = vst [vmem:[%s321 + $0x70] sm:$0xff] %v350
                %v352 = vld [vmem:[%s320 + $0xe8] sm:$0xff]
                %353 = vst [vmem:[%s321 + $0x78] sm:$0xff] %v352
                %v354 = vld [vmem:[%s320 + $0x100] sm:$0xff]
                %355 = vst [vmem:[%s321 + $0x80] sm:$0xff] %v354
                %v356 = vld [vmem:[%s320 + $0x108] sm:$0xff]
                %357 = vst [vmem:[%s321 + $0x88] sm:$0xff] %v356
                %v358 = vld [vmem:[%s320 + $0x120] sm:$0xff]
                %359 = vst [vmem:[%s321 + $0x90] sm:$0xff] %v358
                %v360 = vld [vmem:[%s320 + $0x128] sm:$0xff]
                %361 = vst [vmem:[%s321 + $0x98] sm:$0xff] %v360
                %v362 = vld [vmem:[%s320 + $0x140] sm:$0xff]
                %363 = vst [vmem:[%s321 + $0xa0] sm:$0xff] %v362
                %v364 = vld [vmem:[%s320 + $0x148] sm:$0xff]
                %365 = vst [vmem:[%s321 + $0xa8] sm:$0xff] %v364
                %v366 = vld [vmem:[%s320 + $0x160] sm:$0xff]
                %367 = vst [vmem:[%s321 + $0xb0] sm:$0xff] %v366
                %v368 = vld [vmem:[%s320 + $0x168] sm:$0xff]
                %369 = vst [vmem:[%s321 + $0xb8] sm:$0xff] %v368
                %v370 = vld [vmem:[%s320 + $0x180] sm:$0xff]
                %371 = vst [vmem:[%s321 + $0xc0] sm:$0xff] %v370
                %v372 = vld [vmem:[%s320 + $0x188] sm:$0xff]
                %373 = vst [vmem:[%s321 + $0xc8] sm:$0xff] %v372
                %v374 = vld [vmem:[%s320 + $0x1a0] sm:$0xff]
                %375 = vst [vmem:[%s321 + $0xd0] sm:$0xff] %v374
                %v376 = vld [vmem:[%s320 + $0x1a8] sm:$0xff]
                %377 = vst [vmem:[%s321 + $0xd8] sm:$0xff] %v376
                %v378 = vld [vmem:[%s320 + $0x1c0] sm:$0xff]
                %379 = vst [vmem:[%s321 + $0xe0] sm:$0xff] %v378
                %v380 = vld [vmem:[%s320 + $0x1c8] sm:$0xff]
                %381 = vst [vmem:[%s321 + $0xe8] sm:$0xff] %v380
                %v382 = vld [vmem:[%s320 + $0x1e0] sm:$0xff]
                %383 = vst [vmem:[%s321 + $0xf0] sm:$0xff] %v382
                %v384 = vld [vmem:[%s320 + $0x1e8] sm:$0xff]
                %385 = vst [vmem:[%s321 + $0xf8] sm:$0xff] %v384
              $region57: #{_decoder_rnn_forward.1} parent=51 // loop_footer
                %s319 = sadd.s32 1, %s315
              $region58: #{_decoder_rnn_forward.1} parent=51 // loop_footer_branch
                %314 = sbr.rel target = $region54
              $region59: #{_decoder_rnn_forward.1} parent=51 // loop_exit
                _
            $region52: #{_decoder_rnn_forward.1} parent=47 // pred_fallthru
              _
            // Predicated region
            $region60: #{_decoder_rnn_forward.1} parent=47 // pred_check
              _
            $region61: #{_decoder_rnn_forward.1} parent=47 // pred_check_branch
              %387 = sbr.rel target = $region63
            $region62: #{_decoder_rnn_forward.1} parent=47 // pred_region
              _
            $region63: #{_decoder_rnn_forward.1} parent=47 // pred_fallthru
              _
          $region48: #{_decoder_rnn_forward.1} parent=43 // pred_fallthru
            _
          %388 = vnop
        $region44: #{_decoder_rnn_forward.1} parent=39 // pred_fallthru
          _
        // Predicated region
        $region64: #{_decoder_rnn_forward.1} parent=39 // pred_check
          %p389 = pneg %p189
        $region65: #{_decoder_rnn_forward.1} parent=39 // pred_check_branch
          %391 = sbr.rel (%p389) target = $region67
        $region66: #{_decoder_rnn_forward.1} parent=39 // pred_region
          %s392 = smul.u32 4, %s17
          %p393 = scmp.lt.s32.totalorder %s392, 7
          %s394 = scalar_select %p393, %s392, 7
          %s395 = scalar_lea.vmem %s7, %s394
          %s396 = smul.u32 4, %s17
        $region67: #{_decoder_rnn_forward.1} parent=39 // pred_fallthru
          _
      $region40: #{_decoder_rnn_forward.1} parent=5 // pred_fallthru
        _
      %p397 = scmp.le.s32.totalorder 1, %s17
      %p398 = scmp.lt.s32.totalorder %s17, 3
      %p399 = pnand %p397, %p398
      %p400 = pneg %p399
      // Predicated region
      $region68: #{_decoder_rnn_forward.1} parent=5 // pred_check
        _
      $region69: #{_decoder_rnn_forward.1} parent=5 // pred_check_branch
        %402 = sbr.rel (%p399) target = $region71
      $region70: #{_decoder_rnn_forward.1} parent=5 // pred_region
        %s403 = ssub.s32 %s17, 1
        %s404 = sand.u32 %s156, 1
        %s405 = sand.u32 %s156, 1
        %s406 = smul.addr %s405, 256
        %s407 = scalar_lea.vmem [#allocation5], %s406
        // Predicated region
        $region72: #{_decoder_rnn_forward.1} parent=70 // pred_check
          %p408 = pneg %p169
        $region73: #{_decoder_rnn_forward.1} parent=70 // pred_check_branch
          %410 = sbr.rel (%p408) target = $region75
        $region74: #{_decoder_rnn_forward.1} parent=70 // pred_region
          _
        $region75: #{_decoder_rnn_forward.1} parent=70 // pred_fallthru
          _
        %p411 = pneg %p38
        %p412 = pneg %p35
        %p413 = pneg %p59
        %p414 = pneg %p56
        %p415 = pneg %p80
        %p416 = pneg %p77
        %p417 = pneg %p101
        %p418 = pneg %p98
        %p419 = pneg %p122
        %p420 = pneg %p119
        %p421 = pneg %p143
        %p422 = pneg %p140
        %s423 = sand.u32 %s156, 1
        %s424 = sand.u32 %s156, 1
        %s425 = smul.addr %s424, 256
        %s426 = scalar_lea.vmem [#allocation5], %s425
        %p427 = pneg %p169
        %p428 = pneg %p166
        %s429 = smul.u32 4, %s22
        %p430 = scmp.lt.s32.totalorder %s429, 7
        %s431 = scalar_select %p430, %s429, 7
        %s432 = scalar_lea.vmem %s7, %s431
        %p433 = pneg %p195
        %p434 = pneg %p192
        %p435 = pneg %p221
        %p436 = pneg %p218
        %s437 = smul.u32 4, %s22
        %p438 = scmp.lt.s32.totalorder %s437, 7
        %s439 = scalar_select %p438, %s437, 7
        %s440 = smul.addr %s439, 8
        %s441 = scalar_lea.vmem %s8, %s440
        %p442 = pneg %p242
        %p443 = pneg %p239
        %p444 = pneg %p263
        %p445 = pneg %p260
        %s446 = smul.u32 4, %s22
        %s447 = smul.u32 4, %s22
        %p448 = scmp.lt.s32.totalorder %s447, 7
        %s449 = scalar_select %p448, %s447, 7
        %s450 = scalar_lea.vmem %s7, %s449
        %s451 = smul.u32 4, %s22
        %s452 = smul.u32 4, %s22
        %p453 = scmp.lt.s32.totalorder %s452, 7
        %s454 = scalar_select %p453, %s452, 7
        %s455 = smul.addr %s454, 8
        %s456 = scalar_lea.vmem %s8, %s455
        %s457 = smul.u32 4, %s22
        %p459 = scmp.eq.s32.totalorder %s22, 0
        // Predicated region
        $region76: #{_decoder_rnn_forward.1} parent=70 // pred_check
          %p460 = pneg %p459
        $region77: #{_decoder_rnn_forward.1} parent=70 // pred_check_branch
          %462 = sbr.rel (%p460) target = $region79
        $region78: #{_decoder_rnn_forward.1} parent=70 // pred_region
          %v463 = vld [vmem:[%s0] sm:$0xff]
          %v464 = vmax.f32 %v463, 0.0
          %v465 = vpack.c.bf16 %v464, %v464
          %v466 = vld [vmem:[%s1] sm:$0xff]
          %v467 = vld [vmem:[%s2] sm:$0xff]
          %v468 = vld [vmem:[%s2 + $0x8] sm:$0xf]
          %v469 = vld [vmem:[%s2 + $0xc] sm:$0xff]
          %v470 = vld [vmem:[%s2 + $0x14] sm:$0xf]
          %v471 = vld [vmem:[%s2 + $0x18] sm:$0xff]
          %v472 = vld [vmem:[%s2 + $0x20] sm:$0xf]
          %v473 = vld [vmem:[%s2 + $0x24] sm:$0xff]
          %v474 = vld [vmem:[%s2 + $0x2c] sm:$0xf]
          %v475 = vld [vmem:[%s2 + $0x30] sm:$0xff]
          %v476 = vld [vmem:[%s2 + $0x38] sm:$0xf]
          %v477 = vld [vmem:[%s2 + $0x3c] sm:$0xff]
          %v478 = vld [vmem:[%s2 + $0x44] sm:$0xf]
          %v479 = vld [vmem:[%s2 + $0x48] sm:$0xff]
          %v480 = vld [vmem:[%s2 + $0x50] sm:$0xf]
          %v481 = vld [vmem:[%s2 + $0x54] sm:$0xff]
          %v482 = vld [vmem:[%s2 + $0x5c] sm:$0xf]
          %v483 = vld [vmem:[%s2 + $0x60] sm:$0xff]
          %v484 = vld [vmem:[%s2 + $0x68] sm:$0xf]
          %v485 = vld [vmem:[%s2 + $0x6c] sm:$0xff]
          %v486 = vld [vmem:[%s2 + $0x74] sm:$0xf]
          %v487 = vld [vmem:[%s2 + $0x78] sm:$0xff]
          %v488 = vld [vmem:[%s2 + $0x80] sm:$0xf]
          %v489 = vld [vmem:[%s2 + $0x84] sm:$0xff]
          %v490 = vld [vmem:[%s2 + $0x8c] sm:$0xf]
          %v491 = vld [vmem:[%s2 + $0x90] sm:$0xff]
          %v492 = vld [vmem:[%s2 + $0x98] sm:$0xf]
          %v493 = vld [vmem:[%s2 + $0x9c] sm:$0xff]
          %v494 = vld [vmem:[%s2 + $0xa4] sm:$0xf]
          %v495 = vld [vmem:[%s2 + $0xa8] sm:$0xff]
          %v496 = vld [vmem:[%s2 + $0xb0] sm:$0xf]
          %v497 = vld [vmem:[%s2 + $0xb4] sm:$0xff]
          %v498 = vld [vmem:[%s2 + $0xbc] sm:$0xf]
          %v499 = vld [vmem:[%s4] sm:$0x7]
          %v501 = vlaneseq
          %v502 = vshrl.u32 %v501, 7
          %v503 = vsub.s32 0, %v502
          %v504 = vrot.slane %v499, %v503
          %v505 = vlaneseq
          %v506 = vshrl.u32 %v505, 7
          %v507 = vsub.s32 1, %v506
          %v508 = vrot.slane %v499, %v507
          %v509 = vlaneseq
          %v510 = vshrl.u32 %v509, 7
          %v511 = vsub.s32 2, %v510
          %v512 = vrot.slane %v499, %v511
          %v548 = vunpack.c.l.b16 %v467
          %v549 = vunpack.c.h.b16 %v467
          %v550 = vunpack.c.l.b16 %v468
          %v551 = vunpack.c.l.b16 %v469
          %v552 = vunpack.c.h.b16 %v469
          %v553 = vunpack.c.l.b16 %v470
          %v554 = vunpack.c.l.b16 %v471
          %v555 = vunpack.c.h.b16 %v471
          %v556 = vunpack.c.l.b16 %v472
          %v557 = vunpack.c.l.b16 %v473
          %v558 = vunpack.c.h.b16 %v473
          %v559 = vunpack.c.l.b16 %v474
          %v560 = vunpack.c.l.b16 %v475
          %v561 = vunpack.c.h.b16 %v475
          %v562 = vunpack.c.l.b16 %v476
          %v563 = vunpack.c.l.b16 %v477
          %v564 = vunpack.c.h.b16 %v477
          %v565 = vunpack.c.l.b16 %v478
          %v566 = vunpack.c.l.b16 %v479
          %v567 = vunpack.c.h.b16 %v479
          %v568 = vunpack.c.l.b16 %v480
          %v569 = vunpack.c.l.b16 %v481
          %v570 = vunpack.c.h.b16 %v481
          %v571 = vunpack.c.l.b16 %v482
          %v572 = vunpack.c.l.b16 %v483
          %v573 = vunpack.c.h.b16 %v483
          %v574 = vunpack.c.l.b16 %v484
          %v575 = vunpack.c.l.b16 %v485
          %v576 = vunpack.c.h.b16 %v485
          %v577 = vunpack.c.l.b16 %v486
          %v578 = vunpack.c.l.b16 %v487
          %v579 = vunpack.c.h.b16 %v487
          %v580 = vunpack.c.l.b16 %v488
          %v581 = vunpack.c.l.b16 %v489
          %v582 = vunpack.c.h.b16 %v489
          %v583 = vunpack.c.l.b16 %v490
          %v584 = vunpack.c.l.b16 %v491
          %v585 = vunpack.c.h.b16 %v491
          %v586 = vunpack.c.l.b16 %v492
          %v587 = vunpack.c.l.b16 %v493
          %v588 = vunpack.c.h.b16 %v493
          %v589 = vunpack.c.l.b16 %v494
          %v590 = vunpack.c.l.b16 %v495
          %v591 = vunpack.c.h.b16 %v495
          %v592 = vunpack.c.l.b16 %v496
          %v593 = vunpack.c.l.b16 %v497
          %v594 = vunpack.c.h.b16 %v497
          %v595 = vunpack.c.l.b16 %v498
          %v596 = vpack.c.b16 %v551, %v548
          %v597 = vpack.c.b16 %v552, %v549
          %v598 = vpack.c.b16 %v553, %v550
          %v599 = vpack.c.b16 %v557, %v554
          %v600 = vpack.c.b16 %v558, %v555
          %v601 = vpack.c.b16 %v559, %v556
          %v602 = vpack.c.b16 %v563, %v560
          %v603 = vpack.c.b16 %v564, %v561
          %v604 = vpack.c.b16 %v565, %v562
          %v605 = vpack.c.b16 %v569, %v566
          %v606 = vpack.c.b16 %v570, %v567
          %v607 = vpack.c.b16 %v571, %v568
          %v608 = vpack.c.b16 %v575, %v572
          %v609 = vpack.c.b16 %v576, %v573
          %v610 = vpack.c.b16 %v577, %v574
          %v611 = vpack.c.b16 %v581, %v578
          %v612 = vpack.c.b16 %v582, %v579
          %v613 = vpack.c.b16 %v583, %v580
          %v614 = vpack.c.b16 %v587, %v584
          %v615 = vpack.c.b16 %v588, %v585
          %v616 = vpack.c.b16 %v589, %v586
          %v617 = vpack.c.b16 %v593, %v590
          %v618 = vpack.c.b16 %v594, %v591
          %v619 = vpack.c.b16 %v595, %v592
          %644 = vmatprep.subr.bf16.mxu0 %v618
          %645 = vmatpush1.bf16.msra.mxu0 %v617
          %646 = vmatprep.subr.bf16.mxu0 %v615
          %647 = vmatpush1.bf16.msra.mxu0 %v614
          %648 = vmatprep.subr.bf16.mxu0 %v612
          %649 = vmatpush1.bf16.msra.mxu0 %v611
          %650 = vmatprep.subr.bf16.mxu0 %v609
          %651 = vmatpush1.bf16.msra.mxu0 %v608
          %652 = vmatprep.subr.bf16.mxu0 %v606
          %653 = vmatpush1.bf16.msra.mxu0 %v605
          %654 = vmatprep.subr.bf16.mxu0 %v603
          %655 = vmatpush1.bf16.msra.mxu0 %v602
          %656 = vmatprep.subr.bf16.mxu0 %v600
          %657 = vmatpush1.bf16.msra.mxu0 %v599
          %658 = vmatprep.subr.bf16.mxu0 %v597
          %659 = vmatpush1.bf16.msra.mxu0 %v596
          %660 = vmatprep.subr.bf16.mxu0 0
          %661 = vmatpush2.bf16.msra.mxu0 0
          %662 = vmatprep.subr.bf16.mxu0 0
          %663 = vmatpush2.bf16.msra.mxu0 0
          %664 = vmatprep.subr.bf16.mxu0 0
          %665 = vmatpush2.bf16.msra.mxu0 0
          %666 = vmatprep.subr.bf16.mxu0 0
          %667 = vmatpush2.bf16.msra.mxu0 0
          %668 = vmatprep.subr.bf16.mxu0 0
          %669 = vmatpush2.bf16.msra.mxu0 0
          %670 = vmatprep.subr.bf16.mxu0 0
          %671 = vmatpush2.bf16.msra.mxu0 0
          %672 = vmatprep.subr.bf16.mxu0 0
          %673 = vmatpush2.bf16.msra.mxu0 0
          %674 = vmatprep.subr.bf16.mxu0 0
          %675 = vmatpush2.bf16.msra.mxu0 0
          %676 = vmatprep.mubr.bf16.mxu0 0
          %677 = vmatmul.mubr.bf16.gmra.mxu0 %v465
          %v678 = vpop.f32.mrf.mxu0
          %v679 = vadd.f32 %v504, %v678
          %v680 = vpop.f32.mrf.mxu0
          %v681 = vadd.f32 %v508, %v680
          %v682 = vpop.f32.mrf.mxu0
          %v683 = vpop.f32.mrf.mxu0
          %684 = vdwg.mxu0
          %685 = vmatprep.subr.bf16.mxu0 0
          %686 = vmatpush1.bf16.msra.mxu0 %v619
          %687 = vmatprep.subr.bf16.mxu0 0
          %688 = vmatpush1.bf16.msra.mxu0 %v616
          %689 = vmatprep.subr.bf16.mxu0 0
          %690 = vmatpush1.bf16.msra.mxu0 %v613
          %691 = vmatprep.subr.bf16.mxu0 0
          %692 = vmatpush1.bf16.msra.mxu0 %v610
          %693 = vmatprep.subr.bf16.mxu0 0
          %694 = vmatpush1.bf16.msra.mxu0 %v607
          %695 = vmatprep.subr.bf16.mxu0 0
          %696 = vmatpush1.bf16.msra.mxu0 %v604
          %697 = vmatprep.subr.bf16.mxu0 0
          %698 = vmatpush1.bf16.msra.mxu0 %v601
          %699 = vmatprep.subr.bf16.mxu0 0
          %700 = vmatpush1.bf16.msra.mxu0 %v598
          %701 = vmatprep.subr.bf16.mxu0 0
          %702 = vmatpush2.bf16.msra.mxu0 0
          %703 = vmatprep.subr.bf16.mxu0 0
          %704 = vmatpush2.bf16.msra.mxu0 0
          %705 = vmatprep.subr.bf16.mxu0 0
          %706 = vmatpush2.bf16.msra.mxu0 0
          %707 = vmatprep.subr.bf16.mxu0 0
          %708 = vmatpush2.bf16.msra.mxu0 0
          %709 = vmatprep.subr.bf16.mxu0 0
          %710 = vmatpush2.bf16.msra.mxu0 0
          %711 = vmatprep.subr.bf16.mxu0 0
          %712 = vmatpush2.bf16.msra.mxu0 0
          %713 = vmatprep.subr.bf16.mxu0 0
          %714 = vmatpush2.bf16.msra.mxu0 0
          %715 = vmatprep.subr.bf16.mxu0 0
          %716 = vmatpush2.bf16.msra.mxu0 0
          %717 = vmatprep.mubr.bf16.mxu0 0
          %718 = vmatmul.mubr.bf16.gmra.mxu0 %v465
          %v719 = vpop.f32.mrf.mxu0
          %v720 = vadd.f32 %v512, %v719
          %v721 = vpop.f32.mrf.mxu0
          %v722 = vpop.f32.mrf.mxu0
          %v723 = vpop.f32.mrf.mxu0
          %724 = vdwg.mxu0
          %v725 = vpack.c.bf16 %v466, %v466
          %v726 = vld [vmem:[%s3] sm:$0xff]
          %v727 = vld [vmem:[%s3 + $0x8] sm:$0xf]
          %v728 = vld [vmem:[%s3 + $0xc] sm:$0xff]
          %v729 = vld [vmem:[%s3 + $0x14] sm:$0xf]
          %v730 = vld [vmem:[%s3 + $0x18] sm:$0xff]
          %v731 = vld [vmem:[%s3 + $0x20] sm:$0xf]
          %v732 = vld [vmem:[%s3 + $0x24] sm:$0xff]
          %v733 = vld [vmem:[%s3 + $0x2c] sm:$0xf]
          %v734 = vld [vmem:[%s3 + $0x30] sm:$0xff]
          %v735 = vld [vmem:[%s3 + $0x38] sm:$0xf]
          %v736 = vld [vmem:[%s3 + $0x3c] sm:$0xff]
          %v737 = vld [vmem:[%s3 + $0x44] sm:$0xf]
          %v738 = vld [vmem:[%s3 + $0x48] sm:$0xff]
          %v739 = vld [vmem:[%s3 + $0x50] sm:$0xf]
          %v740 = vld [vmem:[%s3 + $0x54] sm:$0xff]
          %v741 = vld [vmem:[%s3 + $0x5c] sm:$0xf]
          %v742 = vld [vmem:[%s3 + $0x60] sm:$0xff]
          %v743 = vld [vmem:[%s3 + $0x68] sm:$0xf]
          %v744 = vld [vmem:[%s3 + $0x6c] sm:$0xff]
          %v745 = vld [vmem:[%s3 + $0x74] sm:$0xf]
          %v746 = vld [vmem:[%s3 + $0x78] sm:$0xff]
          %v747 = vld [vmem:[%s3 + $0x80] sm:$0xf]
          %v748 = vld [vmem:[%s3 + $0x84] sm:$0xff]
          %v749 = vld [vmem:[%s3 + $0x8c] sm:$0xf]
          %v750 = vld [vmem:[%s3 + $0x90] sm:$0xff]
          %v751 = vld [vmem:[%s3 + $0x98] sm:$0xf]
          %v752 = vld [vmem:[%s3 + $0x9c] sm:$0xff]
          %v753 = vld [vmem:[%s3 + $0xa4] sm:$0xf]
          %v754 = vld [vmem:[%s3 + $0xa8] sm:$0xff]
          %v755 = vld [vmem:[%s3 + $0xb0] sm:$0xf]
          %v756 = vld [vmem:[%s3 + $0xb4] sm:$0xff]
          %v757 = vld [vmem:[%s3 + $0xbc] sm:$0xf]
          %v790 = vunpack.c.l.b16 %v726
          %v791 = vunpack.c.h.b16 %v726
          %v792 = vunpack.c.l.b16 %v727
          %v793 = vunpack.c.l.b16 %v728
          %v794 = vunpack.c.h.b16 %v728
          %v795 = vunpack.c.l.b16 %v729
          %v796 = vunpack.c.l.b16 %v730
          %v797 = vunpack.c.h.b16 %v730
          %v798 = vunpack.c.l.b16 %v731
          %v799 = vunpack.c.l.b16 %v732
          %v800 = vunpack.c.h.b16 %v732
          %v801 = vunpack.c.l.b16 %v733
          %v802 = vunpack.c.l.b16 %v734
          %v803 = vunpack.c.h.b16 %v734
          %v804 = vunpack.c.l.b16 %v735
          %v805 = vunpack.c.l.b16 %v736
          %v806 = vunpack.c.h.b16 %v736
          %v807 = vunpack.c.l.b16 %v737
          %v808 = vunpack.c.l.b16 %v738
          %v809 = vunpack.c.h.b16 %v738
          %v810 = vunpack.c.l.b16 %v739
          %v811 = vunpack.c.l.b16 %v740
          %v812 = vunpack.c.h.b16 %v740
          %v813 = vunpack.c.l.b16 %v741
          %v814 = vunpack.c.l.b16 %v742
          %v815 = vunpack.c.h.b16 %v742
          %v816 = vunpack.c.l.b16 %v743
          %v817 = vunpack.c.l.b16 %v744
          %v818 = vunpack.c.h.b16 %v744
          %v819 = vunpack.c.l.b16 %v745
          %v820 = vunpack.c.l.b16 %v746
          %v821 = vunpack.c.h.b16 %v746
          %v822 = vunpack.c.l.b16 %v747
          %v823 = vunpack.c.l.b16 %v748
          %v824 = vunpack.c.h.b16 %v748
          %v825 = vunpack.c.l.b16 %v749
          %v826 = vunpack.c.l.b16 %v750
          %v827 = vunpack.c.h.b16 %v750
          %v828 = vunpack.c.l.b16 %v751
          %v829 = vunpack.c.l.b16 %v752
          %v830 = vunpack.c.h.b16 %v752
          %v831 = vunpack.c.l.b16 %v753
          %v832 = vunpack.c.l.b16 %v754
          %v833 = vunpack.c.h.b16 %v754
          %v834 = vunpack.c.l.b16 %v755
          %v835 = vunpack.c.l.b16 %v756
          %v836 = vunpack.c.h.b16 %v756
          %v837 = vunpack.c.l.b16 %v757
          %v838 = vpack.c.b16 %v793, %v790
          %v839 = vpack.c.b16 %v794, %v791
          %v840 = vpack.c.b16 %v795, %v792
          %v841 = vpack.c.b16 %v799, %v796
          %v842 = vpack.c.b16 %v800, %v797
          %v843 = vpack.c.b16 %v801, %v798
          %v844 = vpack.c.b16 %v805, %v802
          %v845 = vpack.c.b16 %v806, %v803
          %v846 = vpack.c.b16 %v807, %v804
          %v847 = vpack.c.b16 %v811, %v808
          %v848 = vpack.c.b16 %v812, %v809
          %v849 = vpack.c.b16 %v813, %v810
          %v850 = vpack.c.b16 %v817, %v814
          %v851 = vpack.c.b16 %v818, %v815
          %v852 = vpack.c.b16 %v819, %v816
          %v853 = vpack.c.b16 %v823, %v820
          %v854 = vpack.c.b16 %v824, %v821
          %v855 = vpack.c.b16 %v825, %v822
          %v856 = vpack.c.b16 %v829, %v826
          %v857 = vpack.c.b16 %v830, %v827
          %v858 = vpack.c.b16 %v831, %v828
          %v859 = vpack.c.b16 %v835, %v832
          %v860 = vpack.c.b16 %v836, %v833
          %v861 = vpack.c.b16 %v837, %v834
          %886 = vmatprep.subr.bf16.mxu0 %v860
          %887 = vmatpush1.bf16.msra.mxu0 %v859
          %888 = vmatprep.subr.bf16.mxu0 %v857
          %889 = vmatpush1.bf16.msra.mxu0 %v856
          %890 = vmatprep.subr.bf16.mxu0 %v854
          %891 = vmatpush1.bf16.msra.mxu0 %v853
          %892 = vmatprep.subr.bf16.mxu0 %v851
          %893 = vmatpush1.bf16.msra.mxu0 %v850
          %894 = vmatprep.subr.bf16.mxu0 %v848
          %895 = vmatpush1.bf16.msra.mxu0 %v847
          %896 = vmatprep.subr.bf16.mxu0 %v845
          %897 = vmatpush1.bf16.msra.mxu0 %v844
          %898 = vmatprep.subr.bf16.mxu0 %v842
          %899 = vmatpush1.bf16.msra.mxu0 %v841
          %900 = vmatprep.subr.bf16.mxu0 %v839
          %901 = vmatpush1.bf16.msra.mxu0 %v838
          %902 = vmatprep.subr.bf16.mxu0 0
          %903 = vmatpush2.bf16.msra.mxu0 0
          %904 = vmatprep.subr.bf16.mxu0 0
          %905 = vmatpush2.bf16.msra.mxu0 0
          %906 = vmatprep.subr.bf16.mxu0 0
          %907 = vmatpush2.bf16.msra.mxu0 0
          %908 = vmatprep.subr.bf16.mxu0 0
          %909 = vmatpush2.bf16.msra.mxu0 0
          %910 = vmatprep.subr.bf16.mxu0 0
          %911 = vmatpush2.bf16.msra.mxu0 0
          %912 = vmatprep.subr.bf16.mxu0 0
          %913 = vmatpush2.bf16.msra.mxu0 0
          %914 = vmatprep.subr.bf16.mxu0 0
          %915 = vmatpush2.bf16.msra.mxu0 0
          %916 = vmatprep.subr.bf16.mxu0 0
          %917 = vmatpush2.bf16.msra.mxu0 0
          %918 = vmatprep.mubr.bf16.mxu0 0
          %919 = vmatmul.mubr.bf16.gmra.mxu0 %v725
          %v920 = vpop.f32.mrf.mxu0
          %v921 = vadd.f32 0.0, %v920
          %v922 = vpop.f32.mrf.mxu0
          %v923 = vadd.f32 0.0, %v922
          %v924 = vpop.f32.mrf.mxu0
          %v925 = vpop.f32.mrf.mxu0
          %926 = vdwg.mxu0
          %927 = vmatprep.subr.bf16.mxu0 0
          %928 = vmatpush1.bf16.msra.mxu0 %v861
          %929 = vmatprep.subr.bf16.mxu0 0
          %930 = vmatpush1.bf16.msra.mxu0 %v858
          %931 = vmatprep.subr.bf16.mxu0 0
          %932 = vmatpush1.bf16.msra.mxu0 %v855
          %933 = vmatprep.subr.bf16.mxu0 0
          %934 = vmatpush1.bf16.msra.mxu0 %v852
          %935 = vmatprep.subr.bf16.mxu0 0
          %936 = vmatpush1.bf16.msra.mxu0 %v849
          %937 = vmatprep.subr.bf16.mxu0 0
          %938 = vmatpush1.bf16.msra.mxu0 %v846
          %939 = vmatprep.subr.bf16.mxu0 0
          %940 = vmatpush1.bf16.msra.mxu0 %v843
          %941 = vmatprep.subr.bf16.mxu0 0
          %942 = vmatpush1.bf16.msra.mxu0 %v840
          %943 = vmatprep.subr.bf16.mxu0 0
          %944 = vmatpush2.bf16.msra.mxu0 0
          %945 = vmatprep.subr.bf16.mxu0 0
          %946 = vmatpush2.bf16.msra.mxu0 0
          %947 = vmatprep.subr.bf16.mxu0 0
          %948 = vmatpush2.bf16.msra.mxu0 0
          %949 = vmatprep.subr.bf16.mxu0 0
          %950 = vmatpush2.bf16.msra.mxu0 0
          %951 = vmatprep.subr.bf16.mxu0 0
          %952 = vmatpush2.bf16.msra.mxu0 0
          %953 = vmatprep.subr.bf16.mxu0 0
          %954 = vmatpush2.bf16.msra.mxu0 0
          %955 = vmatprep.subr.bf16.mxu0 0
          %956 = vmatpush2.bf16.msra.mxu0 0
          %957 = vmatprep.subr.bf16.mxu0 0
          %958 = vmatpush2.bf16.msra.mxu0 0
          %959 = vmatprep.mubr.bf16.mxu0 0
          %960 = vmatmul.mubr.bf16.gmra.mxu0 %v725
          %v961 = vpop.f32.mrf.mxu0
          %v962 = vadd.f32 0.0, %v961
          %v963 = vpop.f32.mrf.mxu0
          %v964 = vpop.f32.mrf.mxu0
          %v965 = vpop.f32.mrf.mxu0
          %966 = vdwg.mxu0
          %v967 = vadd.f32 %v679, %v921
          %v968 = vxor.u32 %v967, 2147483648
          %v969 = vmul.f32 %v968, 1.442695
          %v970 = vpow.pop %v969
          %v971 = vadd.f32 %v970, 1.0
          %v972 = vrcp.pop %v971
          %v973 = vmul.f32 1.0, %v972
          %v974 = vadd.f32 %v681, %v923
          %v975 = vxor.u32 %v974, 2147483648
          %v976 = vmul.f32 %v975, 1.442695
          %v977 = vpow.pop %v976
          %v978 = vadd.f32 %v977, 1.0
          %v979 = vrcp.pop %v978
          %v980 = vmul.f32 1.0, %v979
          %v981 = vld [vmem:[%s5] sm:$0x1]
          %v983 = vlaneseq
          %v984 = vshrl.u32 %v983, 7
          %v985 = vsub.s32 0, %v984
          %v986 = vrot.slane %v981, %v985
          %v988 = vadd.f32 %v962, %v986
          %v989 = vmul.f32 %v973, %v988
          %v990 = vadd.f32 %v720, %v989
          %v991 = vtanh.pop %v990
          %v992 = vsub.f32 1.0, %v980
          %v993 = vmul.f32 %v992, %v991
          %v994 = vmul.f32 %v980, %v466
          %v995 = vadd.f32 %v993, %v994
          %996 = vst [vmem:[#allocation2] sm:$0xff] %v995
          %997 = vst [vmem:[%s10] sm:$0xff] %v995
          %vm998 = vcmask 7168
          %999 = vst.msk [vmem:[#allocation3] sm:$0xff] %vm998, -1e+30
          %1000 = vst.msk [vmem:[#allocation4] sm:$0xff] %vm998, 0.0
        $region79: #{_decoder_rnn_forward.1} parent=70 // pred_fallthru
          _
        %v1001 = vld [vmem:[#allocation2] sm:$0xff]
        %v1002 = vpack.c.bf16 %v1001, %v1001
        %v1003 = vld [vmem:[%s407] sm:$0xff]
        %v1004 = vld [vmem:[%s407 + $0x8] sm:$0xff]
        %v1005 = vld [vmem:[%s407 + $0x10] sm:$0xff]
        %v1006 = vld [vmem:[%s407 + $0x18] sm:$0xff]
        %v1007 = vld [vmem:[%s407 + $0x20] sm:$0xff]
        %v1008 = vld [vmem:[%s407 + $0x28] sm:$0xff]
        %v1009 = vld [vmem:[%s407 + $0x30] sm:$0xff]
        %v1010 = vld [vmem:[%s407 + $0x38] sm:$0xff]
        %v1011 = vld [vmem:[%s407 + $0x40] sm:$0xff]
        %v1012 = vld [vmem:[%s407 + $0x48] sm:$0xff]
        %v1013 = vld [vmem:[%s407 + $0x50] sm:$0xff]
        %v1014 = vld [vmem:[%s407 + $0x58] sm:$0xff]
        %v1015 = vld [vmem:[%s407 + $0x60] sm:$0xff]
        %v1016 = vld [vmem:[%s407 + $0x68] sm:$0xff]
        %v1017 = vld [vmem:[%s407 + $0x70] sm:$0xff]
        %v1018 = vld [vmem:[%s407 + $0x78] sm:$0xff]
        %v1019 = vld [vmem:[%s407 + $0x80] sm:$0xff]
        %v1020 = vld [vmem:[%s407 + $0x88] sm:$0xff]
        %v1021 = vld [vmem:[%s407 + $0x90] sm:$0xff]
        %v1022 = vld [vmem:[%s407 + $0x98] sm:$0xff]
        %v1023 = vld [vmem:[%s407 + $0xa0] sm:$0xff]
        %v1024 = vld [vmem:[%s407 + $0xa8] sm:$0xff]
        %v1025 = vld [vmem:[%s407 + $0xb0] sm:$0xff]
        %v1026 = vld [vmem:[%s407 + $0xb8] sm:$0xff]
        %v1027 = vld [vmem:[%s407 + $0xc0] sm:$0xff]
        %v1028 = vld [vmem:[%s407 + $0xc8] sm:$0xff]
        %v1029 = vld [vmem:[%s407 + $0xd0] sm:$0xff]
        %v1030 = vld [vmem:[%s407 + $0xd8] sm:$0xff]
        %v1031 = vld [vmem:[%s407 + $0xe0] sm:$0xff]
        %v1032 = vld [vmem:[%s407 + $0xe8] sm:$0xff]
        %v1033 = vld [vmem:[%s407 + $0xf0] sm:$0xff]
        %v1034 = vld [vmem:[%s407 + $0xf8] sm:$0xff]
        %v1035 = vld [vmem:[%s450] sm:$0xf]
        %v1037 = vlaneseq
        %v1038 = vshrl.u32 %v1037, 7
        %v1039 = vsub.s32 0, %v1038
        %v1040 = vrot.slane %v1035, %v1039
        %v1041 = vlaneseq
        %v1042 = vshrl.u32 %v1041, 7
        %v1043 = vsub.s32 1, %v1042
        %v1044 = vrot.slane %v1035, %v1043
        %v1045 = vlaneseq
        %v1046 = vshrl.u32 %v1045, 7
        %v1047 = vsub.s32 2, %v1046
        %v1048 = vrot.slane %v1035, %v1047
        %v1049 = vlaneseq
        %v1050 = vshrl.u32 %v1049, 7
        %v1051 = vsub.s32 3, %v1050
        %v1052 = vrot.slane %v1035, %v1051
        %v1089 = vunpack.c.l.b16 %v1003
        %v1090 = vunpack.c.h.b16 %v1003
        %v1091 = vunpack.c.l.b16 %v1004
        %v1092 = vunpack.c.h.b16 %v1004
        %v1093 = vunpack.c.l.b16 %v1005
        %v1094 = vunpack.c.h.b16 %v1005
        %v1095 = vunpack.c.l.b16 %v1006
        %v1096 = vunpack.c.h.b16 %v1006
        %v1097 = vunpack.c.l.b16 %v1007
        %v1098 = vunpack.c.h.b16 %v1007
        %v1099 = vunpack.c.l.b16 %v1008
        %v1100 = vunpack.c.h.b16 %v1008
        %v1101 = vunpack.c.l.b16 %v1009
        %v1102 = vunpack.c.h.b16 %v1009
        %v1103 = vunpack.c.l.b16 %v1010
        %v1104 = vunpack.c.h.b16 %v1010
        %v1105 = vunpack.c.l.b16 %v1011
        %v1106 = vunpack.c.h.b16 %v1011
        %v1107 = vunpack.c.l.b16 %v1012
        %v1108 = vunpack.c.h.b16 %v1012
        %v1109 = vunpack.c.l.b16 %v1013
        %v1110 = vunpack.c.h.b16 %v1013
        %v1111 = vunpack.c.l.b16 %v1014
        %v1112 = vunpack.c.h.b16 %v1014
        %v1113 = vunpack.c.l.b16 %v1015
        %v1114 = vunpack.c.h.b16 %v1015
        %v1115 = vunpack.c.l.b16 %v1016
        %v1116 = vunpack.c.h.b16 %v1016
        %v1117 = vunpack.c.l.b16 %v1017
        %v1118 = vunpack.c.h.b16 %v1017
        %v1119 = vunpack.c.l.b16 %v1018
        %v1120 = vunpack.c.h.b16 %v1018
        %v1121 = vunpack.c.l.b16 %v1019
        %v1122 = vunpack.c.h.b16 %v1019
        %v1123 = vunpack.c.l.b16 %v1020
        %v1124 = vunpack.c.h.b16 %v1020
        %v1125 = vunpack.c.l.b16 %v1021
        %v1126 = vunpack.c.h.b16 %v1021
        %v1127 = vunpack.c.l.b16 %v1022
        %v1128 = vunpack.c.h.b16 %v1022
        %v1129 = vunpack.c.l.b16 %v1023
        %v1130 = vunpack.c.h.b16 %v1023
        %v1131 = vunpack.c.l.b16 %v1024
        %v1132 = vunpack.c.h.b16 %v1024
        %v1133 = vunpack.c.l.b16 %v1025
        %v1134 = vunpack.c.h.b16 %v1025
        %v1135 = vunpack.c.l.b16 %v1026
        %v1136 = vunpack.c.h.b16 %v1026
        %v1137 = vunpack.c.l.b16 %v1027
        %v1138 = vunpack.c.h.b16 %v1027
        %v1139 = vunpack.c.l.b16 %v1028
        %v1140 = vunpack.c.h.b16 %v1028
        %v1141 = vunpack.c.l.b16 %v1029
        %v1142 = vunpack.c.h.b16 %v1029
        %v1143 = vunpack.c.l.b16 %v1030
        %v1144 = vunpack.c.h.b16 %v1030
        %v1145 = vunpack.c.l.b16 %v1031
        %v1146 = vunpack.c.h.b16 %v1031
        %v1147 = vunpack.c.l.b16 %v1032
        %v1148 = vunpack.c.h.b16 %v1032
        %v1149 = vunpack.c.l.b16 %v1033
        %v1150 = vunpack.c.h.b16 %v1033
        %v1151 = vunpack.c.l.b16 %v1034
        %v1152 = vunpack.c.h.b16 %v1034
        %v1153 = vpack.c.b16 %v1093, %v1089
        %v1154 = vpack.c.b16 %v1094, %v1090
        %v1155 = vpack.c.b16 %v1095, %v1091
        %v1156 = vpack.c.b16 %v1096, %v1092
        %v1157 = vpack.c.b16 %v1101, %v1097
        %v1158 = vpack.c.b16 %v1102, %v1098
        %v1159 = vpack.c.b16 %v1103, %v1099
        %v1160 = vpack.c.b16 %v1104, %v1100
        %v1161 = vpack.c.b16 %v1109, %v1105
        %v1162 = vpack.c.b16 %v1110, %v1106
        %v1163 = vpack.c.b16 %v1111, %v1107
        %v1164 = vpack.c.b16 %v1112, %v1108
        %v1165 = vpack.c.b16 %v1117, %v1113
        %v1166 = vpack.c.b16 %v1118, %v1114
        %v1167 = vpack.c.b16 %v1119, %v1115
        %v1168 = vpack.c.b16 %v1120, %v1116
        %v1169 = vpack.c.b16 %v1125, %v1121
        %v1170 = vpack.c.b16 %v1126, %v1122
        %v1171 = vpack.c.b16 %v1127, %v1123
        %v1172 = vpack.c.b16 %v1128, %v1124
        %v1173 = vpack.c.b16 %v1133, %v1129
        %v1174 = vpack.c.b16 %v1134, %v1130
        %v1175 = vpack.c.b16 %v1135, %v1131
        %v1176 = vpack.c.b16 %v1136, %v1132
        %v1177 = vpack.c.b16 %v1141, %v1137
        %v1178 = vpack.c.b16 %v1142, %v1138
        %v1179 = vpack.c.b16 %v1143, %v1139
        %v1180 = vpack.c.b16 %v1144, %v1140
        %v1181 = vpack.c.b16 %v1149, %v1145
        %v1182 = vpack.c.b16 %v1150, %v1146
        %v1183 = vpack.c.b16 %v1151, %v1147
        %v1184 = vpack.c.b16 %v1152, %v1148
        %1217 = vmatprep.subr.bf16.mxu0 %v1182
        %1218 = vmatpush1.bf16.msra.mxu0 %v1181
        %1219 = vmatprep.subr.bf16.mxu0 %v1178
        %1220 = vmatpush1.bf16.msra.mxu0 %v1177
        %1221 = vmatprep.subr.bf16.mxu0 %v1174
        %1222 = vmatpush1.bf16.msra.mxu0 %v1173
        %1223 = vmatprep.subr.bf16.mxu0 %v1170
        %1224 = vmatpush1.bf16.msra.mxu0 %v1169
        %1225 = vmatprep.subr.bf16.mxu0 %v1166
        %1226 = vmatpush1.bf16.msra.mxu0 %v1165
        %1227 = vmatprep.subr.bf16.mxu0 %v1162
        %1228 = vmatpush1.bf16.msra.mxu0 %v1161
        %1229 = vmatprep.subr.bf16.mxu0 %v1158
        %1230 = vmatpush1.bf16.msra.mxu0 %v1157
        %1231 = vmatprep.subr.bf16.mxu0 %v1154
        %1232 = vmatpush1.bf16.msra.mxu0 %v1153
        %1233 = vmatprep.subr.bf16.mxu0 0
        %1234 = vmatpush2.bf16.msra.mxu0 0
        %1235 = vmatprep.subr.bf16.mxu0 0
        %1236 = vmatpush2.bf16.msra.mxu0 0
        %1237 = vmatprep.subr.bf16.mxu0 0
        %1238 = vmatpush2.bf16.msra.mxu0 0
        %1239 = vmatprep.subr.bf16.mxu0 0
        %1240 = vmatpush2.bf16.msra.mxu0 0
        %1241 = vmatprep.subr.bf16.mxu0 0
        %1242 = vmatpush2.bf16.msra.mxu0 0
        %1243 = vmatprep.subr.bf16.mxu0 0
        %1244 = vmatpush2.bf16.msra.mxu0 0
        %1245 = vmatprep.subr.bf16.mxu0 0
        %1246 = vmatpush2.bf16.msra.mxu0 0
        %1247 = vmatprep.subr.bf16.mxu0 0
        %1248 = vmatpush2.bf16.msra.mxu0 0
        %1249 = vmatprep.mubr.bf16.mxu0 0
        %1250 = vmatmul.mubr.bf16.gmra.mxu0 %v1002
        %v1251 = vpop.f32.mrf.mxu0
        %v1252 = vadd.f32 %v1040, %v1251
        %v1253 = vpop.f32.mrf.mxu0
        %v1254 = vadd.f32 %v1044, %v1253
        %v1255 = vpop.f32.mrf.mxu0
        %v1256 = vpop.f32.mrf.mxu0
        %1257 = vdwg.mxu0
        %1258 = vmatprep.subr.bf16.mxu0 %v1184
        %1259 = vmatpush1.bf16.msra.mxu0 %v1183
        %1260 = vmatprep.subr.bf16.mxu0 %v1180
        %1261 = vmatpush1.bf16.msra.mxu0 %v1179
        %1262 = vmatprep.subr.bf16.mxu0 %v1176
        %1263 = vmatpush1.bf16.msra.mxu0 %v1175
        %1264 = vmatprep.subr.bf16.mxu0 %v1172
        %1265 = vmatpush1.bf16.msra.mxu0 %v1171
        %1266 = vmatprep.subr.bf16.mxu0 %v1168
        %1267 = vmatpush1.bf16.msra.mxu0 %v1167
        %1268 = vmatprep.subr.bf16.mxu0 %v1164
        %1269 = vmatpush1.bf16.msra.mxu0 %v1163
        %1270 = vmatprep.subr.bf16.mxu0 %v1160
        %1271 = vmatpush1.bf16.msra.mxu0 %v1159
        %1272 = vmatprep.subr.bf16.mxu0 %v1156
        %1273 = vmatpush1.bf16.msra.mxu0 %v1155
        %1274 = vmatprep.subr.bf16.mxu0 0
        %1275 = vmatpush2.bf16.msra.mxu0 0
        %1276 = vmatprep.subr.bf16.mxu0 0
        %1277 = vmatpush2.bf16.msra.mxu0 0
        %1278 = vmatprep.subr.bf16.mxu0 0
        %1279 = vmatpush2.bf16.msra.mxu0 0
        %1280 = vmatprep.subr.bf16.mxu0 0
        %1281 = vmatpush2.bf16.msra.mxu0 0
        %1282 = vmatprep.subr.bf16.mxu0 0
        %1283 = vmatpush2.bf16.msra.mxu0 0
        %1284 = vmatprep.subr.bf16.mxu0 0
        %1285 = vmatpush2.bf16.msra.mxu0 0
        %1286 = vmatprep.subr.bf16.mxu0 0
        %1287 = vmatpush2.bf16.msra.mxu0 0
        %1288 = vmatprep.subr.bf16.mxu0 0
        %1289 = vmatpush2.bf16.msra.mxu0 0
        %1290 = vmatprep.mubr.bf16.mxu0 0
        %1291 = vmatmul.mubr.bf16.gmra.mxu0 %v1002
        %v1292 = vpop.f32.mrf.mxu0
        %v1293 = vadd.f32 %v1048, %v1292
        %v1294 = vpop.f32.mrf.mxu0
        %v1295 = vadd.f32 %v1052, %v1294
        %v1296 = vpop.f32.mrf.mxu0
        %v1297 = vpop.f32.mrf.mxu0
        %1298 = vdwg.mxu0
        %1299 = vst [vmem:[%s456] sm:$0xff] %v1252
        %1300 = vst [vmem:[%s456 + $0x8] sm:$0xff] %v1254
        %1301 = vst [vmem:[%s456 + $0x10] sm:$0xff] %v1293
        %1302 = vst [vmem:[%s456 + $0x18] sm:$0xff] %v1295
        %v1303 = vld [vmem:[#allocation3] sm:$0xff]
        %v1304 = vmax.f32 %v1252, %v1254
        %v1305 = vmax.f32 %v1293, %v1295
        %v1306 = vmax.f32 %v1304, %v1305
        %1307 = vmax.xlane.f32.xlu0 %v1306
        %v1308 = vpop.xlane.xlu0 %1307
        %v1309 = vmax.f32 %v1303, %v1308
        %v1310 = vld [vmem:[#allocation4] sm:$0xff]
        %v1311 = vsub.f32 %v1303, %v1309
        %v1312 = vmul.f32 %v1311, 1.442695
        %v1313 = vpow.pop %v1312
        %v1314 = vmul.f32 %v1310, %v1313
        %1316 = vset.pattern.permute.xlu0 0
        %1317 = vperm.xlu0 %1316, %v1309
        %v1318 = vpop.permute.xlu0 %1317
        %v1320 = vsub.f32 %v1252, %v1318
        %v1321 = vsub.f32 %v1254, %v1318
        %v1322 = vsub.f32 %v1293, %v1318
        %v1323 = vsub.f32 %v1295, %v1318
        %v1324 = vmul.f32 %v1320, 1.442695
        %v1325 = vpow.pop %v1324
        %v1326 = vmul.f32 %v1321, 1.442695
        %v1327 = vpow.pop %v1326
        %v1328 = vmul.f32 %v1322, 1.442695
        %v1329 = vpow.pop %v1328
        %v1330 = vmul.f32 %v1323, 1.442695
        %v1331 = vpow.pop %v1330
        %v1332 = vadd.f32 %v1325, %v1327
        %v1333 = vadd.f32 %v1332, %v1329
        %v1334 = vadd.f32 %v1333, %v1331
        %1335 = vadd.xlane.f32.xlu0 %v1334
        %v1336 = vpop.xlane.xlu0 %1335
        %v1337 = vadd.f32 %v1314, %v1336
        %vm1338 = vcmask 7168
        %1339 = vst.msk [vmem:[#allocation4] sm:$0xff] %vm1338, %v1337
        %1340 = vst.msk [vmem:[#allocation3] sm:$0xff] %vm1338, %v1309
        %p1341 = scmp.eq.s32.totalorder %s22, 1
        // Predicated region
        $region80: #{_decoder_rnn_forward.1} parent=70 // pred_check
          %p1342 = pneg %p1341
        $region81: #{_decoder_rnn_forward.1} parent=70 // pred_check_branch
          %1344 = sbr.rel (%p1342) target = $region83
        $region82: #{_decoder_rnn_forward.1} parent=70 // pred_region
          %v1345 = vld [vmem:[#allocation3] sm:$0xff]
          %v1346 = vld [vmem:[#allocation4] sm:$0xff]
          %v1347 = vlog2.pop %v1346
          %v1348 = vmul.f32 %v1347, 0.6931472
          %v1349 = vadd.f32 %v1345, %v1348
          %1350 = vst.msk [vmem:[%s9] sm:$0xff] %vm1338, %v1349
        $region83: #{_decoder_rnn_forward.1} parent=70 // pred_fallthru
          _
        %s1351 = smul.u32 4, %s22
        %p1352 = scmp.lt.s32.totalorder %s1351, 7
        %s1353 = scalar_select %p1352, %s1351, 7
        %s1354 = smul.addr %s1353, 8
        %s1355 = scalar_lea.vmem %s8, %s1354
        // Predicated region
        $region84: #{_decoder_rnn_forward.1} parent=70 // pred_check
          %p1356 = pneg %p218
        $region85: #{_decoder_rnn_forward.1} parent=70 // pred_check_branch
          %1358 = sbr.rel (%p1356) target = $region87
        $region86: #{_decoder_rnn_forward.1} parent=70 // pred_region
          %s1359 = smul.u32 4, %s22
        $region87: #{_decoder_rnn_forward.1} parent=70 // pred_fallthru
          _
        // Predicated region
        $region88: #{_decoder_rnn_forward.1} parent=70 // pred_check
          %p1360 = pneg %p239
        $region89: #{_decoder_rnn_forward.1} parent=70 // pred_check_branch
          %1362 = sbr.rel (%p1360) target = $region91
        $region90: #{_decoder_rnn_forward.1} parent=70 // pred_region
          _
        $region91: #{_decoder_rnn_forward.1} parent=70 // pred_fallthru
          _
        // Predicated region
        $region92: #{_decoder_rnn_forward.1} parent=70 // pred_check
          %p1363 = pneg %p260
        $region93: #{_decoder_rnn_forward.1} parent=70 // pred_check_branch
          %1365 = sbr.rel (%p1363) target = $region95
        $region94: #{_decoder_rnn_forward.1} parent=70 // pred_region
          _
        $region95: #{_decoder_rnn_forward.1} parent=70 // pred_fallthru
          _
        // Predicated region
        $region96: #{_decoder_rnn_forward.1} parent=70 // pred_check
          %p1366 = pneg %p239
        $region97: #{_decoder_rnn_forward.1} parent=70 // pred_check_branch
          %1368 = sbr.rel (%p1366) target = $region99
        $region98: #{_decoder_rnn_forward.1} parent=70 // pred_region
          _
        $region99: #{_decoder_rnn_forward.1} parent=70 // pred_fallthru
          _
        // Predicated region
        $region100: #{_decoder_rnn_forward.1} parent=70 // pred_check
          %p1369 = pneg %p260
        $region101: #{_decoder_rnn_forward.1} parent=70 // pred_check_branch
          %1371 = sbr.rel (%p1369) target = $region103
        $region102: #{_decoder_rnn_forward.1} parent=70 // pred_region
          _
        $region103: #{_decoder_rnn_forward.1} parent=70 // pred_fallthru
          _
      $region71: #{_decoder_rnn_forward.1} parent=5 // pred_fallthru
        _
      %p1372 = scmp.le.s32.totalorder 2, %s17
      // Predicated region
      $region104: #{_decoder_rnn_forward.1} parent=5 // pred_check
        %p1373 = pneg %p1372
      $region105: #{_decoder_rnn_forward.1} parent=5 // pred_check_branch
        %1375 = sbr.rel (%p1373) target = $region107
      $region106: #{_decoder_rnn_forward.1} parent=5 // pred_region
        %s1376 = ssub.s32 %s17, 2
        // Predicated region
        $region108: #{_decoder_rnn_forward.1} parent=106 // pred_check
          %p1377 = pneg %p224
        $region109: #{_decoder_rnn_forward.1} parent=106 // pred_check_branch
          %1379 = sbr.rel (%p1377) target = $region111
        $region110: #{_decoder_rnn_forward.1} parent=106 // pred_region
          %s1380 = smul.u32 4, %s23
          %p1381 = scmp.lt.s32.totalorder %s1380, 7
          %s1382 = scalar_select %p1381, %s1380, 7
          %s1383 = smul.addr %s1382, 8
          %s1384 = scalar_lea.vmem %s8, %s1383
        $region111: #{_decoder_rnn_forward.1} parent=106 // pred_fallthru
          _
      $region107: #{_decoder_rnn_forward.1} parent=5 // pred_fallthru
        _
    $region6: #{_decoder_rnn_forward.1} parent=1 // loop_footer
      %s21 = sadd.s32 1, %s17
    $region7: #{_decoder_rnn_forward.1} parent=1 // loop_footer_branch
      %16 = sbr.rel target = $region3
    $region8: #{_decoder_rnn_forward.1} parent=1 // loop_exit
      _

</llo_original>
